<compile_context>
chip_gen: v7x
topology: tpu7x:2x2x1
jax: 0.10.0
libtpu: 0.0.40
codegen_flags: <defaults>
</compile_context>

<pallas_src>
import functools

import jax
import jax.numpy as jnp
import numpy as np
from jax.experimental import pallas as pl
from jax.experimental.pallas import tpu as pltpu


# ----------------------------------------------------------------------------
# Pallas kernel
# ----------------------------------------------------------------------------
def lstm_decoder_kernel(z_ref, wl_ref, bl_ref, wx_ref, whh_ref,
                        bias0_ref, bias1_ref, wfl_ref, bfl_ref,
                        wsig_ref, bsig_ref,
                        mu_ref, sig_ref,
                        *, hidden_size, n_features, seq_len):
    H = hidden_size
    F = n_features
    T = seq_len

    z = z_ref[...]                                            # (B, zdim) f32
    B = z.shape[0]

    # from_latent: hidden_state = z @ Wl + bl  -> split into (h, c).
    # bf16 operands, f32 accumulate (MXU-native path on v6e/v7x).
    hc = (jnp.dot(z.astype(jnp.bfloat16), wl_ref[...],
                  preferred_element_type=jnp.float32) + bl_ref[...])
    h = hc[:, :H]                                             # (B, H) f32
    c = hc[:, H:]                                             # (B, H) f32

    wx = wx_ref[...]        # (H, 4H) bf16  == wfl @ wih  (from_lstm folded in)
    whh = whh_ref[...]      # (H, 4H) bf16
    wfl = wfl_ref[...]      # (H, F)  f32   (mu epilogue, off-chain)

    # Hoisted broadcasts (the static unroll would re-emit them every step).
    bias0 = jnp.broadcast_to(bias0_ref[...], (B, 4 * H))      # b_ih + b_hh
    bias1 = jnp.broadcast_to(bias1_ref[...], (B, 4 * H))      # ... + bfl @ wih
    bfl = jnp.broadcast_to(bfl_ref[...], (B, F))
    sig = jnp.broadcast_to(bsig_ref[...], (B, F))             # sigma accumulator

    # Statically unrolled recurrence (seq_len is small, known at trace time).
    for t in range(T):
        if t == 0:
            # x_0 == 0: the input-to-hidden matmul contributes nothing.
            gates = jnp.dot(h.astype(jnp.bfloat16), whh,
                            preferred_element_type=jnp.float32) + bias0
        else:
            # Two accumulating bf16 dots instead of a lane-concat + one dot:
            # no XLU op on the serial chain, second dot pipelines into the MXU.
            gates = (jnp.dot(th.astype(jnp.bfloat16), wx,        # noqa: F821
                             preferred_element_type=jnp.float32)
                     + jnp.dot(h.astype(jnp.bfloat16), whh,
                               preferred_element_type=jnp.float32)
                     + bias1)

        # Two full-width transcendental passes (EUP) instead of four narrow ones.
        sg = jax.nn.sigmoid(gates)                            # (B, 4H)
        tg = jnp.tanh(gates)                                  # (B, 4H)
        i_g = sg[:, 0 * H:1 * H]
        f_g = sg[:, 1 * H:2 * H]
        g_g = tg[:, 2 * H:3 * H]
        o_g = sg[:, 3 * H:4 * H]

        c = f_g * c + i_g * g_g
        h = o_g * jnp.tanh(c)                                 # LSTM output step t
        th = jnp.tanh(h)                                      # activation(x_)

        # Off-critical-chain epilogue work (MXU has huge slack at these sizes):
        # mu_t straight into its (T, B, F) slot -> full leading-index store,
        # no masked lane/sublane-offset writes, no wrapper-side permute input.
        mu_ref[t] = jnp.dot(th, wfl, preferred_element_type=jnp.float32) + bfl
        # sigma_from_hidden accumulated in-register; wsig pre-permuted t-major.
        sig = sig + jnp.dot(h, wsig_ref[t * H:(t + 1) * H, :],
                            preferred_element_type=jnp.float32)

    # Stable softplus.
    sig_ref[...] = jnp.logaddexp(sig, 0.0)


# ----------------------------------------------------------------------------
# Wrapper
# ----------------------------------------------------------------------------
def lstm_decoder_forward(z, params, *, hidden_size, n_features, seq_len):
    H, F, T = hidden_size, n_features, seq_len
    B = z.shape[0]

    # ---- one-time weight algebra (hoisted / cached once in production) ------
    # Fold from_lstm into the input-to-hidden gate weights:
    #   x_t @ wih = tanh(h_t) @ (wfl @ wih) + (bfl @ wih)
    wx = params["wfl"] @ params["wih"]                        # (H, 4H)
    bx = params["bfl"] @ params["wih"]                        # (1, 4H)
    bias0 = params["bg"]                                      # (1, 4H)  step 0
    bias1 = params["bg"] + bx                                 # (1, 4H)  steps >= 1
    # sigma_from_hidden weight re-ordered t-major so the per-step slice is a
    # sublane-aligned static slice:  wsig_th[t*H + h, f] = w_sigma[f, h*T + t]
    wsig_th = (params["wsig_flat"].reshape(H, T, F)
               .transpose(1, 0, 2).reshape(T * H, F))         # (T*H, F)

    # Recurrent-chain matmul operands in bf16 (f32 accumulation in-kernel).
    wl_b = params["wl"].astype(jnp.bfloat16)
    wx_b = wx.astype(jnp.bfloat16)
    whh_b = params["whh"].astype(jnp.bfloat16)

    inputs = (z, wl_b, params["bl"], wx_b, whh_b, bias0, bias1,
              params["wfl"], params["bfl"], wsig_th, params["bsig"])

    vmem = pl.BlockSpec(memory_space=pltpu.MemorySpace.VMEM)
    # TODO(synk): once production batch B grows past a handful of rows, add a
    # batch grid axis with dimension_semantics=("parallel",) so both v7x
    # TensorCores get work and sublanes / the MXU actually fill up (the only
    # >2x lever at these shapes); size per-tile VMEM against v7x's 64 MiB.
    mu_tbf, sigma = pl.pallas_call(
        functools.partial(lstm_decoder_kernel, hidden_size=H,
                          n_features=F, seq_len=T),
        out_shape=(jax.ShapeDtypeStruct((T, B, F), jnp.float32),
                   jax.ShapeDtypeStruct((B, F), jnp.float32)),
        in_specs=[vmem] * len(inputs),
        out_specs=(vmem, vmem),
    )(*inputs)

    # Layout glue only; runs inside the same jitted executable as the kernel.
    mu = jnp.transpose(mu_tbf, (1, 2, 0))                     # (B, F, T)
    sigma = sigma.reshape(B, F, 1)                            # (B, F, 1)
    return mu, sigma


# ----------------------------------------------------------------------------
# Pure-JAX reference (mirrors the PyTorch forward exactly, strict f32)
# ----------------------------------------------------------------------------
def reference_forward(z, params, *, hidden_size, n_features, seq_len):
    H, F, T = hidden_size, n_features, seq_len
    B = z.shape[0]
    hc = z @ params["wl"] + params["bl"]
    h, c = hc[:, :H], hc[:, H:]
    x = jnp.zeros((B, F), dtype=jnp.float32)
    mus, xss = [], []
    for _ in range(T):
        gates = x @ params["wih"] + h @ params["whh"] + params["bg"]
        i_g = jax.nn.sigmoid(gates[:, :H])
        f_g = jax.nn.sigmoid(gates[:, H:2 * H])
        g_g = jnp.tanh(gates[:, 2 * H:3 * H])
        o_g = jax.nn.sigmoid(gates[:, 3 * H:])
        c = f_g * c + i_g * g_g
        h = o_g * jnp.tanh(c)
        xss.append(h)
        x = jnp.tanh(h) @ params["wfl"] + params["bfl"]
        mus.append(x)
    mu = jnp.transpose(jnp.stack(mus, 0), (1, 2, 0))          # (B, F, T)
    xs = jnp.transpose(jnp.stack(xss, 0), (1, 2, 0)).reshape(B, H * T)
    sigma = jax.nn.softplus(xs @ params["wsig_flat"] + params["bsig"])
    return mu, sigma.reshape(B, F, 1)


# ----------------------------------------------------------------------------
# Deterministic parameter construction (synthetic weights, PyTorch shapes)
# ----------------------------------------------------------------------------
def make_params(key, zdim, n_features, hidden_size, seq_len):
    H, F, T = hidden_size, n_features, seq_len
    ks = jax.random.split(key, 10)

    def u(k, shape, bound):
        return jax.random.uniform(k, shape, jnp.float32, -bound, bound)

    # PyTorch-native shapes
    w_from_latent = u(ks[0], (2 * H, zdim), 1.0 / np.sqrt(zdim))
    b_from_latent = u(ks[1], (2 * H,), 1.0 / np.sqrt(zdim))
    w_ih = u(ks[2], (4 * H, F), 1.0 / np.sqrt(H))
    w_hh = u(ks[3], (4 * H, H), 1.0 / np.sqrt(H))
    b_ih = u(ks[4], (4 * H,), 1.0 / np.sqrt(H))
    b_hh = u(ks[5], (4 * H,), 1.0 / np.sqrt(H))
    w_from_lstm = u(ks[6], (F, H), 1.0 / np.sqrt(H))
    b_from_lstm = u(ks[7], (F,), 1.0 / np.sqrt(H))
    w_sigma = u(ks[8], (F, H * T), 1.0 / np.sqrt(H * T))
    b_sigma = u(ks[9], (F,), 1.0 / np.sqrt(H * T))

    wsig_flat = w_sigma.T                                     # (H*T, F), [h*T + t, f]

    return {
        "wl": w_from_latent.T,                                # (zdim, 2H)
        "bl": b_from_latent.reshape(1, 2 * H),
        "wih": w_ih.T,                                        # (F, 4H)
        "whh": w_hh.T,                                        # (H, 4H)
        "bg": (b_ih + b_hh).reshape(1, 4 * H),
        "wfl": w_from_lstm.T,                                 # (H, F)
        "bfl": b_from_lstm.reshape(1, F),
        "wsig_flat": wsig_flat,                               # (H*T, F)
        "bsig": b_sigma.reshape(1, F),
    }


# ----------------------------------------------------------------------------
if __name__ == "__main__":
    B, ZDIM, N_FEATURES, HIDDEN, SEQ_LEN = 2, 8, 4, 32, 8

    key = jax.random.PRNGKey(0)
    k_z, k_p = jax.random.split(key)
    z = jax.random.normal(k_z, (B, ZDIM), dtype=jnp.float32)
    params = make_params(k_p, ZDIM, N_FEATURES, HIDDEN, SEQ_LEN)

    fwd = jax.jit(functools.partial(lstm_decoder_forward, hidden_size=HIDDEN,
                                    n_features=N_FEATURES, seq_len=SEQ_LEN))
    mu, sigma = fwd(z, params)
    jax.block_until_ready((mu, sigma))

    mu_ref, sigma_ref = reference_forward(
        z, params, hidden_size=HIDDEN, n_features=N_FEATURES, seq_len=SEQ_LEN)

    assert mu.shape == (B, N_FEATURES, SEQ_LEN), mu.shape
    assert sigma.shape == (B, N_FEATURES, 1), sigma.shape
    # bf16 operands on the recurrent gate matmuls (perf review) -> compare to
    # the strict-f32 reference at bf16-level tolerance.
    np.testing.assert_allclose(np.asarray(mu), np.asarray(mu_ref),
                               rtol=2e-2, atol=2e-2)
    np.testing.assert_allclose(np.asarray(sigma), np.asarray(sigma_ref),
                               rtol=2e-2, atol=2e-2)
    print("KERNEL_OK")
</pallas_src>

<mosaic_0001>
module attributes {stable_mosaic.version = 11 : i64} {
  func.func @lstm_decoder_kernel(%arg0: memref<2x8xf32, #tpu.memory_space<vmem>>, %arg1: memref<8x64xbf16, #tpu.memory_space<vmem>>, %arg2: memref<1x64xf32, #tpu.memory_space<vmem>>, %arg3: memref<32x128xbf16, #tpu.memory_space<vmem>>, %arg4: memref<32x128xbf16, #tpu.memory_space<vmem>>, %arg5: memref<1x128xf32, #tpu.memory_space<vmem>>, %arg6: memref<1x128xf32, #tpu.memory_space<vmem>>, %arg7: memref<32x4xf32, #tpu.memory_space<vmem>>, %arg8: memref<1x4xf32, #tpu.memory_space<vmem>>, %arg9: memref<256x4xf32, #tpu.memory_space<vmem>>, %arg10: memref<1x4xf32, #tpu.memory_space<vmem>>, %arg11: memref<8x2x4xf32, #tpu.memory_space<vmem>>, %arg12: memref<2x4xf32, #tpu.memory_space<vmem>>) attributes {dimension_semantics = [], scalar_prefetch = 0 : i64, scratch_operands = 0 : i64, tpu.core_type = #tpu.core_type<tc>} {
    %c0 = arith.constant 0 : index
    %c0_0 = arith.constant 0 : index
    %0 = vector.load %arg0[%c0, %c0_0] : memref<2x8xf32, #tpu.memory_space<vmem>>, vector<2x8xf32>
    %1 = arith.truncf %0 : vector<2x8xf32> to vector<2x8xbf16>
    %c0_1 = arith.constant 0 : index
    %c0_2 = arith.constant 0 : index
    %2 = vector.load %arg1[%c0_1, %c0_2] : memref<8x64xbf16, #tpu.memory_space<vmem>>, vector<8x64xbf16>
    %cst = arith.constant dense<0.000000e+00> : vector<2x64xf32>
    %3 = tpu.matmul %1, %2, %cst {dimension_numbers = #tpu.dot_dimension_numbers<[1], [0], [0], [1], [0, 0, 1, 1], [], []>} : vector<2x8xbf16>, vector<8x64xbf16>, vector<2x64xf32> -> vector<2x64xf32>
    %c0_3 = arith.constant 0 : index
    %c0_4 = arith.constant 0 : index
    %4 = vector.load %arg2[%c0_3, %c0_4] : memref<1x64xf32, #tpu.memory_space<vmem>>, vector<1x64xf32>
    %5 = vector.broadcast %4 : vector<1x64xf32> to vector<2x64xf32>
    %6 = arith.addf %3, %5 : vector<2x64xf32>
    %7 = vector.extract_strided_slice %6 {offsets = [0, 0], sizes = [2, 32], strides = [1, 1]} : vector<2x64xf32> to vector<2x32xf32>
    %8 = vector.extract_strided_slice %6 {offsets = [0, 32], sizes = [2, 32], strides = [1, 1]} : vector<2x64xf32> to vector<2x32xf32>
    %c0_5 = arith.constant 0 : index
    %c0_6 = arith.constant 0 : index
    %9 = vector.load %arg3[%c0_5, %c0_6] : memref<32x128xbf16, #tpu.memory_space<vmem>>, vector<32x128xbf16>
    %c0_7 = arith.constant 0 : index
    %c0_8 = arith.constant 0 : index
    %10 = vector.load %arg4[%c0_7, %c0_8] : memref<32x128xbf16, #tpu.memory_space<vmem>>, vector<32x128xbf16>
    %c0_9 = arith.constant 0 : index
    %c0_10 = arith.constant 0 : index
    %11 = vector.load %arg7[%c0_9, %c0_10] : memref<32x4xf32, #tpu.memory_space<vmem>>, vector<32x4xf32>
    %c0_11 = arith.constant 0 : index
    %c0_12 = arith.constant 0 : index
    %12 = vector.load %arg5[%c0_11, %c0_12] : memref<1x128xf32, #tpu.memory_space<vmem>>, vector<1x128xf32>
    %13 = vector.shape_cast %12 : vector<1x128xf32> to vector<1x128xf32>
    %14 = vector.broadcast %13 : vector<1x128xf32> to vector<2x128xf32>
    %c0_13 = arith.constant 0 : index
    %c0_14 = arith.constant 0 : index
    %15 = vector.load %arg6[%c0_13, %c0_14] : memref<1x128xf32, #tpu.memory_space<vmem>>, vector<1x128xf32>
    %16 = vector.shape_cast %15 : vector<1x128xf32> to vector<1x128xf32>
    %17 = vector.broadcast %16 : vector<1x128xf32> to vector<2x128xf32>
    %c0_15 = arith.constant 0 : index
    %c0_16 = arith.constant 0 : index
    %18 = vector.load %arg8[%c0_15, %c0_16] : memref<1x4xf32, #tpu.memory_space<vmem>>, vector<1x4xf32>
    %19 = vector.shape_cast %18 : vector<1x4xf32> to vector<1x4xf32>
    %20 = vector.broadcast %19 : vector<1x4xf32> to vector<2x4xf32>
    %c0_17 = arith.constant 0 : index
    %c0_18 = arith.constant 0 : index
    %21 = vector.load %arg10[%c0_17, %c0_18] : memref<1x4xf32, #tpu.memory_space<vmem>>, vector<1x4xf32>
    %22 = vector.shape_cast %21 : vector<1x4xf32> to vector<1x4xf32>
    %23 = vector.broadcast %22 : vector<1x4xf32> to vector<2x4xf32>
    %24 = arith.truncf %7 : vector<2x32xf32> to vector<2x32xbf16>
    %cst_19 = arith.constant dense<0.000000e+00> : vector<2x128xf32>
    %25 = tpu.matmul %24, %10, %cst_19 {dimension_numbers = #tpu.dot_dimension_numbers<[1], [0], [0], [1], [0, 0, 1, 1], [], []>} : vector<2x32xbf16>, vector<32x128xbf16>, vector<2x128xf32> -> vector<2x128xf32>
    %26 = arith.addf %25, %14 : vector<2x128xf32>
    %27 = arith.negf %26 : vector<2x128xf32>
    %28 = math.exp %27 : vector<2x128xf32>
    %cst_20 = arith.constant 1.000000e+00 : f32
    %29 = vector.broadcast %cst_20 : f32 to vector<2x128xf32>
    %30 = arith.addf %29, %28 : vector<2x128xf32>
    %31 = arith.divf %29, %30 : vector<2x128xf32>
    %32 = math.tanh %26 : vector<2x128xf32>
    %33 = vector.extract_strided_slice %31 {offsets = [0, 0], sizes = [2, 32], strides = [1, 1]} : vector<2x128xf32> to vector<2x32xf32>
    %34 = vector.extract_strided_slice %31 {offsets = [0, 32], sizes = [2, 32], strides = [1, 1]} : vector<2x128xf32> to vector<2x32xf32>
    %35 = vector.extract_strided_slice %32 {offsets = [0, 64], sizes = [2, 32], strides = [1, 1]} : vector<2x128xf32> to vector<2x32xf32>
    %36 = vector.extract_strided_slice %31 {offsets = [0, 96], sizes = [2, 32], strides = [1, 1]} : vector<2x128xf32> to vector<2x32xf32>
    %37 = arith.mulf %34, %8 : vector<2x32xf32>
    %38 = arith.mulf %33, %35 : vector<2x32xf32>
    %39 = arith.addf %37, %38 : vector<2x32xf32>
    %40 = math.tanh %39 : vector<2x32xf32>
    %41 = arith.mulf %36, %40 : vector<2x32xf32>
    %42 = math.tanh %41 : vector<2x32xf32>
    %cst_21 = arith.constant dense<0.000000e+00> : vector<2x4xf32>
    %43 = tpu.matmul %42, %11, %cst_21 {dimension_numbers = #tpu.dot_dimension_numbers<[1], [0], [0], [1], [0, 0, 1, 1], [], []>} : vector<2x32xf32>, vector<32x4xf32>, vector<2x4xf32> -> vector<2x4xf32>
    %44 = arith.addf %43, %20 : vector<2x4xf32>
    %c0_22 = arith.constant 0 : index
    %c0_23 = arith.constant 0 : index
    %c0_24 = arith.constant 0 : index
    %45 = vector.load %arg11[%c0_22, %c0_23, %c0_24] : memref<8x2x4xf32, #tpu.memory_space<vmem>>, vector<1x2x4xf32>
    %46 = vector.shape_cast %45 : vector<1x2x4xf32> to vector<2x4xf32>
    %47 = vector.shape_cast %44 : vector<2x4xf32> to vector<1x2x4xf32>
    tpu.vector_store %arg11[%c0_22, %c0_23, %c0_24], %47 {strides = array<i32>} : memref<8x2x4xf32, #tpu.memory_space<vmem>>, vector<1x2x4xf32>,
    %c0_25 = arith.constant 0 : index
    %c0_26 = arith.constant 0 : index
    %48 = vector.load %arg9[%c0_25, %c0_26] : memref<256x4xf32, #tpu.memory_space<vmem>>, vector<32x4xf32>
    %cst_27 = arith.constant dense<0.000000e+00> : vector<2x4xf32>
    %49 = tpu.matmul %41, %48, %cst_27 {dimension_numbers = #tpu.dot_dimension_numbers<[1], [0], [0], [1], [0, 0, 1, 1], [], []>} : vector<2x32xf32>, vector<32x4xf32>, vector<2x4xf32> -> vector<2x4xf32>
    %50 = arith.addf %23, %49 : vector<2x4xf32>
    %51 = arith.truncf %42 : vector<2x32xf32> to vector<2x32xbf16>
    %cst_28 = arith.constant dense<0.000000e+00> : vector<2x128xf32>
    %52 = tpu.matmul %51, %9, %cst_28 {dimension_numbers = #tpu.dot_dimension_numbers<[1], [0], [0], [1], [0, 0, 1, 1], [], []>} : vector<2x32xbf16>, vector<32x128xbf16>, vector<2x128xf32> -> vector<2x128xf32>
    %53 = arith.truncf %41 : vector<2x32xf32> to vector<2x32xbf16>
    %cst_29 = arith.constant dense<0.000000e+00> : vector<2x128xf32>
    %54 = tpu.matmul %53, %10, %cst_29 {dimension_numbers = #tpu.dot_dimension_numbers<[1], [0], [0], [1], [0, 0, 1, 1], [], []>} : vector<2x32xbf16>, vector<32x128xbf16>, vector<2x128xf32> -> vector<2x128xf32>
    %55 = arith.addf %52, %54 : vector<2x128xf32>
    %56 = arith.addf %55, %17 : vector<2x128xf32>
    %57 = arith.negf %56 : vector<2x128xf32>
    %58 = math.exp %57 : vector<2x128xf32>
    %cst_30 = arith.constant 1.000000e+00 : f32
    %59 = vector.broadcast %cst_30 : f32 to vector<2x128xf32>
    %60 = arith.addf %59, %58 : vector<2x128xf32>
    %61 = arith.divf %59, %60 : vector<2x128xf32>
    %62 = math.tanh %56 : vector<2x128xf32>
    %63 = vector.extract_strided_slice %61 {offsets = [0, 0], sizes = [2, 32], strides = [1, 1]} : vector<2x128xf32> to vector<2x32xf32>
    %64 = vector.extract_strided_slice %61 {offsets = [0, 32], sizes = [2, 32], strides = [1, 1]} : vector<2x128xf32> to vector<2x32xf32>
    %65 = vector.extract_strided_slice %62 {offsets = [0, 64], sizes = [2, 32], strides = [1, 1]} : vector<2x128xf32> to vector<2x32xf32>
    %66 = vector.extract_strided_slice %61 {offsets = [0, 96], sizes = [2, 32], strides = [1, 1]} : vector<2x128xf32> to vector<2x32xf32>
    %67 = arith.mulf %64, %39 : vector<2x32xf32>
    %68 = arith.mulf %63, %65 : vector<2x32xf32>
    %69 = arith.addf %67, %68 : vector<2x32xf32>
    %70 = math.tanh %69 : vector<2x32xf32>
    %71 = arith.mulf %66, %70 : vector<2x32xf32>
    %72 = math.tanh %71 : vector<2x32xf32>
    %cst_31 = arith.constant dense<0.000000e+00> : vector<2x4xf32>
    %73 = tpu.matmul %72, %11, %cst_31 {dimension_numbers = #tpu.dot_dimension_numbers<[1], [0], [0], [1], [0, 0, 1, 1], [], []>} : vector<2x32xf32>, vector<32x4xf32>, vector<2x4xf32> -> vector<2x4xf32>
    %74 = arith.addf %73, %20 : vector<2x4xf32>
    %c1 = arith.constant 1 : index
    %c0_32 = arith.constant 0 : index
    %c0_33 = arith.constant 0 : index
    %75 = vector.load %arg11[%c1, %c0_32, %c0_33] : memref<8x2x4xf32, #tpu.memory_space<vmem>>, vector<1x2x4xf32>
    %76 = vector.shape_cast %75 : vector<1x2x4xf32> to vector<2x4xf32>
    %77 = vector.shape_cast %74 : vector<2x4xf32> to vector<1x2x4xf32>
    tpu.vector_store %arg11[%c1, %c0_32, %c0_33], %77 {strides = array<i32>} : memref<8x2x4xf32, #tpu.memory_space<vmem>>, vector<1x2x4xf32>,
    %c32 = arith.constant 32 : index
    %c0_34 = arith.constant 0 : index
    %78 = vector.load %arg9[%c32, %c0_34] : memref<256x4xf32, #tpu.memory_space<vmem>>, vector<32x4xf32>
    %cst_35 = arith.constant dense<0.000000e+00> : vector<2x4xf32>
    %79 = tpu.matmul %71, %78, %cst_35 {dimension_numbers = #tpu.dot_dimension_numbers<[1], [0], [0], [1], [0, 0, 1, 1], [], []>} : vector<2x32xf32>, vector<32x4xf32>, vector<2x4xf32> -> vector<2x4xf32>
    %80 = arith.addf %50, %79 : vector<2x4xf32>
    %81 = arith.truncf %72 : vector<2x32xf32> to vector<2x32xbf16>
    %cst_36 = arith.constant dense<0.000000e+00> : vector<2x128xf32>
    %82 = tpu.matmul %81, %9, %cst_36 {dimension_numbers = #tpu.dot_dimension_numbers<[1], [0], [0], [1], [0, 0, 1, 1], [], []>} : vector<2x32xbf16>, vector<32x128xbf16>, vector<2x128xf32> -> vector<2x128xf32>
    %83 = arith.truncf %71 : vector<2x32xf32> to vector<2x32xbf16>
    %cst_37 = arith.constant dense<0.000000e+00> : vector<2x128xf32>
    %84 = tpu.matmul %83, %10, %cst_37 {dimension_numbers = #tpu.dot_dimension_numbers<[1], [0], [0], [1], [0, 0, 1, 1], [], []>} : vector<2x32xbf16>, vector<32x128xbf16>, vector<2x128xf32> -> vector<2x128xf32>
    %85 = arith.addf %82, %84 : vector<2x128xf32>
    %86 = arith.addf %85, %17 : vector<2x128xf32>
    %87 = arith.negf %86 : vector<2x128xf32>
    %88 = math.exp %87 : vector<2x128xf32>
    %cst_38 = arith.constant 1.000000e+00 : f32
    %89 = vector.broadcast %cst_38 : f32 to vector<2x128xf32>
    %90 = arith.addf %89, %88 : vector<2x128xf32>
    %91 = arith.divf %89, %90 : vector<2x128xf32>
    %92 = math.tanh %86 : vector<2x128xf32>
    %93 = vector.extract_strided_slice %91 {offsets = [0, 0], sizes = [2, 32], strides = [1, 1]} : vector<2x128xf32> to vector<2x32xf32>
    %94 = vector.extract_strided_slice %91 {offsets = [0, 32], sizes = [2, 32], strides = [1, 1]} : vector<2x128xf32> to vector<2x32xf32>
    %95 = vector.extract_strided_slice %92 {offsets = [0, 64], sizes = [2, 32], strides = [1, 1]} : vector<2x128xf32> to vector<2x32xf32>
    %96 = vector.extract_strided_slice %91 {offsets = [0, 96], sizes = [2, 32], strides = [1, 1]} : vector<2x128xf32> to vector<2x32xf32>
    %97 = arith.mulf %94, %69 : vector<2x32xf32>
    %98 = arith.mulf %93, %95 : vector<2x32xf32>
    %99 = arith.addf %97, %98 : vector<2x32xf32>
    %100 = math.tanh %99 : vector<2x32xf32>
    %101 = arith.mulf %96, %100 : vector<2x32xf32>
    %102 = math.tanh %101 : vector<2x32xf32>
    %cst_39 = arith.constant dense<0.000000e+00> : vector<2x4xf32>
    %103 = tpu.matmul %102, %11, %cst_39 {dimension_numbers = #tpu.dot_dimension_numbers<[1], [0], [0], [1], [0, 0, 1, 1], [], []>} : vector<2x32xf32>, vector<32x4xf32>, vector<2x4xf32> -> vector<2x4xf32>
    %104 = arith.addf %103, %20 : vector<2x4xf32>
    %c2 = arith.constant 2 : index
    %c0_40 = arith.constant 0 : index
    %c0_41 = arith.constant 0 : index
    %105 = vector.load %arg11[%c2, %c0_40, %c0_41] : memref<8x2x4xf32, #tpu.memory_space<vmem>>, vector<1x2x4xf32>
    %106 = vector.shape_cast %105 : vector<1x2x4xf32> to vector<2x4xf32>
    %107 = vector.shape_cast %104 : vector<2x4xf32> to vector<1x2x4xf32>
    tpu.vector_store %arg11[%c2, %c0_40, %c0_41], %107 {strides = array<i32>} : memref<8x2x4xf32, #tpu.memory_space<vmem>>, vector<1x2x4xf32>,
    %c64 = arith.constant 64 : index
    %c0_42 = arith.constant 0 : index
    %108 = vector.load %arg9[%c64, %c0_42] : memref<256x4xf32, #tpu.memory_space<vmem>>, vector<32x4xf32>
    %cst_43 = arith.constant dense<0.000000e+00> : vector<2x4xf32>
    %109 = tpu.matmul %101, %108, %cst_43 {dimension_numbers = #tpu.dot_dimension_numbers<[1], [0], [0], [1], [0, 0, 1, 1], [], []>} : vector<2x32xf32>, vector<32x4xf32>, vector<2x4xf32> -> vector<2x4xf32>
    %110 = arith.addf %80, %109 : vector<2x4xf32>
    %111 = arith.truncf %102 : vector<2x32xf32> to vector<2x32xbf16>
    %cst_44 = arith.constant dense<0.000000e+00> : vector<2x128xf32>
    %112 = tpu.matmul %111, %9, %cst_44 {dimension_numbers = #tpu.dot_dimension_numbers<[1], [0], [0], [1], [0, 0, 1, 1], [], []>} : vector<2x32xbf16>, vector<32x128xbf16>, vector<2x128xf32> -> vector<2x128xf32>
    %113 = arith.truncf %101 : vector<2x32xf32> to vector<2x32xbf16>
    %cst_45 = arith.constant dense<0.000000e+00> : vector<2x128xf32>
    %114 = tpu.matmul %113, %10, %cst_45 {dimension_numbers = #tpu.dot_dimension_numbers<[1], [0], [0], [1], [0, 0, 1, 1], [], []>} : vector<2x32xbf16>, vector<32x128xbf16>, vector<2x128xf32> -> vector<2x128xf32>
    %115 = arith.addf %112, %114 : vector<2x128xf32>
    %116 = arith.addf %115, %17 : vector<2x128xf32>
    %117 = arith.negf %116 : vector<2x128xf32>
    %118 = math.exp %117 : vector<2x128xf32>
    %cst_46 = arith.constant 1.000000e+00 : f32
    %119 = vector.broadcast %cst_46 : f32 to vector<2x128xf32>
    %120 = arith.addf %119, %118 : vector<2x128xf32>
    %121 = arith.divf %119, %120 : vector<2x128xf32>
    %122 = math.tanh %116 : vector<2x128xf32>
    %123 = vector.extract_strided_slice %121 {offsets = [0, 0], sizes = [2, 32], strides = [1, 1]} : vector<2x128xf32> to vector<2x32xf32>
    %124 = vector.extract_strided_slice %121 {offsets = [0, 32], sizes = [2, 32], strides = [1, 1]} : vector<2x128xf32> to vector<2x32xf32>
    %125 = vector.extract_strided_slice %122 {offsets = [0, 64], sizes = [2, 32], strides = [1, 1]} : vector<2x128xf32> to vector<2x32xf32>
    %126 = vector.extract_strided_slice %121 {offsets = [0, 96], sizes = [2, 32], strides = [1, 1]} : vector<2x128xf32> to vector<2x32xf32>
    %127 = arith.mulf %124, %99 : vector<2x32xf32>
    %128 = arith.mulf %123, %125 : vector<2x32xf32>
    %129 = arith.addf %127, %128 : vector<2x32xf32>
    %130 = math.tanh %129 : vector<2x32xf32>
    %131 = arith.mulf %126, %130 : vector<2x32xf32>
    %132 = math.tanh %131 : vector<2x32xf32>
    %cst_47 = arith.constant dense<0.000000e+00> : vector<2x4xf32>
    %133 = tpu.matmul %132, %11, %cst_47 {dimension_numbers = #tpu.dot_dimension_numbers<[1], [0], [0], [1], [0, 0, 1, 1], [], []>} : vector<2x32xf32>, vector<32x4xf32>, vector<2x4xf32> -> vector<2x4xf32>
    %134 = arith.addf %133, %20 : vector<2x4xf32>
    %c3 = arith.constant 3 : index
    %c0_48 = arith.constant 0 : index
    %c0_49 = arith.constant 0 : index
    %135 = vector.load %arg11[%c3, %c0_48, %c0_49] : memref<8x2x4xf32, #tpu.memory_space<vmem>>, vector<1x2x4xf32>
    %136 = vector.shape_cast %135 : vector<1x2x4xf32> to vector<2x4xf32>
    %137 = vector.shape_cast %134 : vector<2x4xf32> to vector<1x2x4xf32>
    tpu.vector_store %arg11[%c3, %c0_48, %c0_49], %137 {strides = array<i32>} : memref<8x2x4xf32, #tpu.memory_space<vmem>>, vector<1x2x4xf32>,
    %c96 = arith.constant 96 : index
    %c0_50 = arith.constant 0 : index
    %138 = vector.load %arg9[%c96, %c0_50] : memref<256x4xf32, #tpu.memory_space<vmem>>, vector<32x4xf32>
    %cst_51 = arith.constant dense<0.000000e+00> : vector<2x4xf32>
    %139 = tpu.matmul %131, %138, %cst_51 {dimension_numbers = #tpu.dot_dimension_numbers<[1], [0], [0], [1], [0, 0, 1, 1], [], []>} : vector<2x32xf32>, vector<32x4xf32>, vector<2x4xf32> -> vector<2x4xf32>
    %140 = arith.addf %110, %139 : vector<2x4xf32>
    %141 = arith.truncf %132 : vector<2x32xf32> to vector<2x32xbf16>
    %cst_52 = arith.constant dense<0.000000e+00> : vector<2x128xf32>
    %142 = tpu.matmul %141, %9, %cst_52 {dimension_numbers = #tpu.dot_dimension_numbers<[1], [0], [0], [1], [0, 0, 1, 1], [], []>} : vector<2x32xbf16>, vector<32x128xbf16>, vector<2x128xf32> -> vector<2x128xf32>
    %143 = arith.truncf %131 : vector<2x32xf32> to vector<2x32xbf16>
    %cst_53 = arith.constant dense<0.000000e+00> : vector<2x128xf32>
    %144 = tpu.matmul %143, %10, %cst_53 {dimension_numbers = #tpu.dot_dimension_numbers<[1], [0], [0], [1], [0, 0, 1, 1], [], []>} : vector<2x32xbf16>, vector<32x128xbf16>, vector<2x128xf32> -> vector<2x128xf32>
    %145 = arith.addf %142, %144 : vector<2x128xf32>
    %146 = arith.addf %145, %17 : vector<2x128xf32>
    %147 = arith.negf %146 : vector<2x128xf32>
    %148 = math.exp %147 : vector<2x128xf32>
    %cst_54 = arith.constant 1.000000e+00 : f32
    %149 = vector.broadcast %cst_54 : f32 to vector<2x128xf32>
    %150 = arith.addf %149, %148 : vector<2x128xf32>
    %151 = arith.divf %149, %150 : vector<2x128xf32>
    %152 = math.tanh %146 : vector<2x128xf32>
    %153 = vector.extract_strided_slice %151 {offsets = [0, 0], sizes = [2, 32], strides = [1, 1]} : vector<2x128xf32> to vector<2x32xf32>
    %154 = vector.extract_strided_slice %151 {offsets = [0, 32], sizes = [2, 32], strides = [1, 1]} : vector<2x128xf32> to vector<2x32xf32>
    %155 = vector.extract_strided_slice %152 {offsets = [0, 64], sizes = [2, 32], strides = [1, 1]} : vector<2x128xf32> to vector<2x32xf32>
    %156 = vector.extract_strided_slice %151 {offsets = [0, 96], sizes = [2, 32], strides = [1, 1]} : vector<2x128xf32> to vector<2x32xf32>
    %157 = arith.mulf %154, %129 : vector<2x32xf32>
    %158 = arith.mulf %153, %155 : vector<2x32xf32>
    %159 = arith.addf %157, %158 : vector<2x32xf32>
    %160 = math.tanh %159 : vector<2x32xf32>
    %161 = arith.mulf %156, %160 : vector<2x32xf32>
    %162 = math.tanh %161 : vector<2x32xf32>
    %cst_55 = arith.constant dense<0.000000e+00> : vector<2x4xf32>
    %163 = tpu.matmul %162, %11, %cst_55 {dimension_numbers = #tpu.dot_dimension_numbers<[1], [0], [0], [1], [0, 0, 1, 1], [], []>} : vector<2x32xf32>, vector<32x4xf32>, vector<2x4xf32> -> vector<2x4xf32>
    %164 = arith.addf %163, %20 : vector<2x4xf32>
    %c4 = arith.constant 4 : index
    %c0_56 = arith.constant 0 : index
    %c0_57 = arith.constant 0 : index
    %165 = vector.load %arg11[%c4, %c0_56, %c0_57] : memref<8x2x4xf32, #tpu.memory_space<vmem>>, vector<1x2x4xf32>
    %166 = vector.shape_cast %165 : vector<1x2x4xf32> to vector<2x4xf32>
    %167 = vector.shape_cast %164 : vector<2x4xf32> to vector<1x2x4xf32>
    tpu.vector_store %arg11[%c4, %c0_56, %c0_57], %167 {strides = array<i32>} : memref<8x2x4xf32, #tpu.memory_space<vmem>>, vector<1x2x4xf32>,
    %c128 = arith.constant 128 : index
    %c0_58 = arith.constant 0 : index
    %168 = vector.load %arg9[%c128, %c0_58] : memref<256x4xf32, #tpu.memory_space<vmem>>, vector<32x4xf32>
    %cst_59 = arith.constant dense<0.000000e+00> : vector<2x4xf32>
    %169 = tpu.matmul %161, %168, %cst_59 {dimension_numbers = #tpu.dot_dimension_numbers<[1], [0], [0], [1], [0, 0, 1, 1], [], []>} : vector<2x32xf32>, vector<32x4xf32>, vector<2x4xf32> -> vector<2x4xf32>
    %170 = arith.addf %140, %169 : vector<2x4xf32>
    %171 = arith.truncf %162 : vector<2x32xf32> to vector<2x32xbf16>
    %cst_60 = arith.constant dense<0.000000e+00> : vector<2x128xf32>
    %172 = tpu.matmul %171, %9, %cst_60 {dimension_numbers = #tpu.dot_dimension_numbers<[1], [0], [0], [1], [0, 0, 1, 1], [], []>} : vector<2x32xbf16>, vector<32x128xbf16>, vector<2x128xf32> -> vector<2x128xf32>
    %173 = arith.truncf %161 : vector<2x32xf32> to vector<2x32xbf16>
    %cst_61 = arith.constant dense<0.000000e+00> : vector<2x128xf32>
    %174 = tpu.matmul %173, %10, %cst_61 {dimension_numbers = #tpu.dot_dimension_numbers<[1], [0], [0], [1], [0, 0, 1, 1], [], []>} : vector<2x32xbf16>, vector<32x128xbf16>, vector<2x128xf32> -> vector<2x128xf32>
    %175 = arith.addf %172, %174 : vector<2x128xf32>
    %176 = arith.addf %175, %17 : vector<2x128xf32>
    %177 = arith.negf %176 : vector<2x128xf32>
    %178 = math.exp %177 : vector<2x128xf32>
    %cst_62 = arith.constant 1.000000e+00 : f32
    %179 = vector.broadcast %cst_62 : f32 to vector<2x128xf32>
    %180 = arith.addf %179, %178 : vector<2x128xf32>
    %181 = arith.divf %179, %180 : vector<2x128xf32>
    %182 = math.tanh %176 : vector<2x128xf32>
    %183 = vector.extract_strided_slice %181 {offsets = [0, 0], sizes = [2, 32], strides = [1, 1]} : vector<2x128xf32> to vector<2x32xf32>
    %184 = vector.extract_strided_slice %181 {offsets = [0, 32], sizes = [2, 32], strides = [1, 1]} : vector<2x128xf32> to vector<2x32xf32>
    %185 = vector.extract_strided_slice %182 {offsets = [0, 64], sizes = [2, 32], strides = [1, 1]} : vector<2x128xf32> to vector<2x32xf32>
    %186 = vector.extract_strided_slice %181 {offsets = [0, 96], sizes = [2, 32], strides = [1, 1]} : vector<2x128xf32> to vector<2x32xf32>
    %187 = arith.mulf %184, %159 : vector<2x32xf32>
    %188 = arith.mulf %183, %185 : vector<2x32xf32>
    %189 = arith.addf %187, %188 : vector<2x32xf32>
    %190 = math.tanh %189 : vector<2x32xf32>
    %191 = arith.mulf %186, %190 : vector<2x32xf32>
    %192 = math.tanh %191 : vector<2x32xf32>
    %cst_63 = arith.constant dense<0.000000e+00> : vector<2x4xf32>
    %193 = tpu.matmul %192, %11, %cst_63 {dimension_numbers = #tpu.dot_dimension_numbers<[1], [0], [0], [1], [0, 0, 1, 1], [], []>} : vector<2x32xf32>, vector<32x4xf32>, vector<2x4xf32> -> vector<2x4xf32>
    %194 = arith.addf %193, %20 : vector<2x4xf32>
    %c5 = arith.constant 5 : index
    %c0_64 = arith.constant 0 : index
    %c0_65 = arith.constant 0 : index
    %195 = vector.load %arg11[%c5, %c0_64, %c0_65] : memref<8x2x4xf32, #tpu.memory_space<vmem>>, vector<1x2x4xf32>
    %196 = vector.shape_cast %195 : vector<1x2x4xf32> to vector<2x4xf32>
    %197 = vector.shape_cast %194 : vector<2x4xf32> to vector<1x2x4xf32>
    tpu.vector_store %arg11[%c5, %c0_64, %c0_65], %197 {strides = array<i32>} : memref<8x2x4xf32, #tpu.memory_space<vmem>>, vector<1x2x4xf32>,
    %c160 = arith.constant 160 : index
    %c0_66 = arith.constant 0 : index
    %198 = vector.load %arg9[%c160, %c0_66] : memref<256x4xf32, #tpu.memory_space<vmem>>, vector<32x4xf32>
    %cst_67 = arith.constant dense<0.000000e+00> : vector<2x4xf32>
    %199 = tpu.matmul %191, %198, %cst_67 {dimension_numbers = #tpu.dot_dimension_numbers<[1], [0], [0], [1], [0, 0, 1, 1], [], []>} : vector<2x32xf32>, vector<32x4xf32>, vector<2x4xf32> -> vector<2x4xf32>
    %200 = arith.addf %170, %199 : vector<2x4xf32>
    %201 = arith.truncf %192 : vector<2x32xf32> to vector<2x32xbf16>
    %cst_68 = arith.constant dense<0.000000e+00> : vector<2x128xf32>
    %202 = tpu.matmul %201, %9, %cst_68 {dimension_numbers = #tpu.dot_dimension_numbers<[1], [0], [0], [1], [0, 0, 1, 1], [], []>} : vector<2x32xbf16>, vector<32x128xbf16>, vector<2x128xf32> -> vector<2x128xf32>
    %203 = arith.truncf %191 : vector<2x32xf32> to vector<2x32xbf16>
    %cst_69 = arith.constant dense<0.000000e+00> : vector<2x128xf32>
    %204 = tpu.matmul %203, %10, %cst_69 {dimension_numbers = #tpu.dot_dimension_numbers<[1], [0], [0], [1], [0, 0, 1, 1], [], []>} : vector<2x32xbf16>, vector<32x128xbf16>, vector<2x128xf32> -> vector<2x128xf32>
    %205 = arith.addf %202, %204 : vector<2x128xf32>
    %206 = arith.addf %205, %17 : vector<2x128xf32>
    %207 = arith.negf %206 : vector<2x128xf32>
    %208 = math.exp %207 : vector<2x128xf32>
    %cst_70 = arith.constant 1.000000e+00 : f32
    %209 = vector.broadcast %cst_70 : f32 to vector<2x128xf32>
    %210 = arith.addf %209, %208 : vector<2x128xf32>
    %211 = arith.divf %209, %210 : vector<2x128xf32>
    %212 = math.tanh %206 : vector<2x128xf32>
    %213 = vector.extract_strided_slice %211 {offsets = [0, 0], sizes = [2, 32], strides = [1, 1]} : vector<2x128xf32> to vector<2x32xf32>
    %214 = vector.extract_strided_slice %211 {offsets = [0, 32], sizes = [2, 32], strides = [1, 1]} : vector<2x128xf32> to vector<2x32xf32>
    %215 = vector.extract_strided_slice %212 {offsets = [0, 64], sizes = [2, 32], strides = [1, 1]} : vector<2x128xf32> to vector<2x32xf32>
    %216 = vector.extract_strided_slice %211 {offsets = [0, 96], sizes = [2, 32], strides = [1, 1]} : vector<2x128xf32> to vector<2x32xf32>
    %217 = arith.mulf %214, %189 : vector<2x32xf32>
    %218 = arith.mulf %213, %215 : vector<2x32xf32>
    %219 = arith.addf %217, %218 : vector<2x32xf32>
    %220 = math.tanh %219 : vector<2x32xf32>
    %221 = arith.mulf %216, %220 : vector<2x32xf32>
    %222 = math.tanh %221 : vector<2x32xf32>
    %cst_71 = arith.constant dense<0.000000e+00> : vector<2x4xf32>
    %223 = tpu.matmul %222, %11, %cst_71 {dimension_numbers = #tpu.dot_dimension_numbers<[1], [0], [0], [1], [0, 0, 1, 1], [], []>} : vector<2x32xf32>, vector<32x4xf32>, vector<2x4xf32> -> vector<2x4xf32>
    %224 = arith.addf %223, %20 : vector<2x4xf32>
    %c6 = arith.constant 6 : index
    %c0_72 = arith.constant 0 : index
    %c0_73 = arith.constant 0 : index
    %225 = vector.load %arg11[%c6, %c0_72, %c0_73] : memref<8x2x4xf32, #tpu.memory_space<vmem>>, vector<1x2x4xf32>
    %226 = vector.shape_cast %225 : vector<1x2x4xf32> to vector<2x4xf32>
    %227 = vector.shape_cast %224 : vector<2x4xf32> to vector<1x2x4xf32>
    tpu.vector_store %arg11[%c6, %c0_72, %c0_73], %227 {strides = array<i32>} : memref<8x2x4xf32, #tpu.memory_space<vmem>>, vector<1x2x4xf32>,
    %c192 = arith.constant 192 : index
    %c0_74 = arith.constant 0 : index
    %228 = vector.load %arg9[%c192, %c0_74] : memref<256x4xf32, #tpu.memory_space<vmem>>, vector<32x4xf32>
    %cst_75 = arith.constant dense<0.000000e+00> : vector<2x4xf32>
    %229 = tpu.matmul %221, %228, %cst_75 {dimension_numbers = #tpu.dot_dimension_numbers<[1], [0], [0], [1], [0, 0, 1, 1], [], []>} : vector<2x32xf32>, vector<32x4xf32>, vector<2x4xf32> -> vector<2x4xf32>
    %230 = arith.addf %200, %229 : vector<2x4xf32>
    %231 = arith.truncf %222 : vector<2x32xf32> to vector<2x32xbf16>
    %cst_76 = arith.constant dense<0.000000e+00> : vector<2x128xf32>
    %232 = tpu.matmul %231, %9, %cst_76 {dimension_numbers = #tpu.dot_dimension_numbers<[1], [0], [0], [1], [0, 0, 1, 1], [], []>} : vector<2x32xbf16>, vector<32x128xbf16>, vector<2x128xf32> -> vector<2x128xf32>
    %233 = arith.truncf %221 : vector<2x32xf32> to vector<2x32xbf16>
    %cst_77 = arith.constant dense<0.000000e+00> : vector<2x128xf32>
    %234 = tpu.matmul %233, %10, %cst_77 {dimension_numbers = #tpu.dot_dimension_numbers<[1], [0], [0], [1], [0, 0, 1, 1], [], []>} : vector<2x32xbf16>, vector<32x128xbf16>, vector<2x128xf32> -> vector<2x128xf32>
    %235 = arith.addf %232, %234 : vector<2x128xf32>
    %236 = arith.addf %235, %17 : vector<2x128xf32>
    %237 = arith.negf %236 : vector<2x128xf32>
    %238 = math.exp %237 : vector<2x128xf32>
    %cst_78 = arith.constant 1.000000e+00 : f32
    %239 = vector.broadcast %cst_78 : f32 to vector<2x128xf32>
    %240 = arith.addf %239, %238 : vector<2x128xf32>
    %241 = arith.divf %239, %240 : vector<2x128xf32>
    %242 = math.tanh %236 : vector<2x128xf32>
    %243 = vector.extract_strided_slice %241 {offsets = [0, 0], sizes = [2, 32], strides = [1, 1]} : vector<2x128xf32> to vector<2x32xf32>
    %244 = vector.extract_strided_slice %241 {offsets = [0, 32], sizes = [2, 32], strides = [1, 1]} : vector<2x128xf32> to vector<2x32xf32>
    %245 = vector.extract_strided_slice %242 {offsets = [0, 64], sizes = [2, 32], strides = [1, 1]} : vector<2x128xf32> to vector<2x32xf32>
    %246 = vector.extract_strided_slice %241 {offsets = [0, 96], sizes = [2, 32], strides = [1, 1]} : vector<2x128xf32> to vector<2x32xf32>
    %247 = arith.mulf %244, %219 : vector<2x32xf32>
    %248 = arith.mulf %243, %245 : vector<2x32xf32>
    %249 = arith.addf %247, %248 : vector<2x32xf32>
    %250 = math.tanh %249 : vector<2x32xf32>
    %251 = arith.mulf %246, %250 : vector<2x32xf32>
    %252 = math.tanh %251 : vector<2x32xf32>
    %cst_79 = arith.constant dense<0.000000e+00> : vector<2x4xf32>
    %253 = tpu.matmul %252, %11, %cst_79 {dimension_numbers = #tpu.dot_dimension_numbers<[1], [0], [0], [1], [0, 0, 1, 1], [], []>} : vector<2x32xf32>, vector<32x4xf32>, vector<2x4xf32> -> vector<2x4xf32>
    %254 = arith.addf %253, %20 : vector<2x4xf32>
    %c7 = arith.constant 7 : index
    %c0_80 = arith.constant 0 : index
    %c0_81 = arith.constant 0 : index
    %255 = vector.load %arg11[%c7, %c0_80, %c0_81] : memref<8x2x4xf32, #tpu.memory_space<vmem>>, vector<1x2x4xf32>
    %256 = vector.shape_cast %255 : vector<1x2x4xf32> to vector<2x4xf32>
    %257 = vector.shape_cast %254 : vector<2x4xf32> to vector<1x2x4xf32>
    tpu.vector_store %arg11[%c7, %c0_80, %c0_81], %257 {strides = array<i32>} : memref<8x2x4xf32, #tpu.memory_space<vmem>>, vector<1x2x4xf32>,
    %c224 = arith.constant 224 : index
    %c0_82 = arith.constant 0 : index
    %258 = vector.load %arg9[%c224, %c0_82] : memref<256x4xf32, #tpu.memory_space<vmem>>, vector<32x4xf32>
    %cst_83 = arith.constant dense<0.000000e+00> : vector<2x4xf32>
    %259 = tpu.matmul %251, %258, %cst_83 {dimension_numbers = #tpu.dot_dimension_numbers<[1], [0], [0], [1], [0, 0, 1, 1], [], []>} : vector<2x32xf32>, vector<32x4xf32>, vector<2x4xf32> -> vector<2x4xf32>
    %260 = arith.addf %230, %259 : vector<2x4xf32>
    %cst_84 = arith.constant 0.000000e+00 : f32
    %261 = vector.broadcast %cst_84 : f32 to vector<2x4xf32>
    %262 = arith.maximumf %260, %261 : vector<2x4xf32>
    %263 = vector.broadcast %cst_84 : f32 to vector<2x4xf32>
    %264 = arith.subf %260, %263 : vector<2x4xf32>
    %265 = arith.cmpf one, %264, %264 : vector<2x4xf32>
    %266 = vector.broadcast %cst_84 : f32 to vector<2x4xf32>
    %267 = arith.addf %260, %266 : vector<2x4xf32>
    %268 = math.absf %264 : vector<2x4xf32>
    %cst_85 = arith.constant 0.000000e+00 : f32
    %269 = vector.broadcast %cst_85 : f32 to vector<2x4xf32>
    %270 = arith.subf %269, %268 : vector<2x4xf32>
    %271 = math.exp %270 : vector<2x4xf32>
    %272 = math.log1p %271 : vector<2x4xf32>
    %273 = arith.addf %262, %272 : vector<2x4xf32>
    %274 = arith.select %265, %267, %273 : vector<2x4xi1>, vector<2x4xf32>
    %c0_86 = arith.constant 0 : index
    %c0_87 = arith.constant 0 : index
    %275 = vector.load %arg12[%c0_86, %c0_87] : memref<2x4xf32, #tpu.memory_space<vmem>>, vector<2x4xf32>
    tpu.vector_store %arg12[%c0_86, %c0_87], %274 {strides = array<i32>} : memref<2x4xf32, #tpu.memory_space<vmem>>, vector<2x4xf32>,
    return
  }
}

</mosaic_0001>

<llo_original>
// kernel: lstm_decoder_forward.1
$region0: #{lstm_decoder_forward.1}
  #allocation0 [shape = 'u32[]', space=smem, size = 0x4, offset = 0x4, fixed_abs, tag = 'smem constant byte address 0x4 - core index']
  #allocation1 [shape = 'u32[144,128]{1,0:T(1,128)}', space=vmem, size = 0x12000, scoped, tag = 'internal scratch']
  %s0 = inlined_call_operand.vmem [shape: f32[2,8], index: 0, kind: input, shape index: {}]
  %s1 = inlined_call_operand.vmem [shape: bf16[8,64], index: 1, kind: input, shape index: {}]
  %s2 = inlined_call_operand.vmem [shape: f32[1,64], index: 2, kind: input, shape index: {}]
  %s3 = inlined_call_operand.vmem [shape: bf16[32,128], index: 3, kind: input, shape index: {}]
  %s4 = inlined_call_operand.vmem [shape: bf16[32,128], index: 4, kind: input, shape index: {}]
  %s5 = inlined_call_operand.vmem [shape: f32[1,128], index: 5, kind: input, shape index: {}]
  %s6 = inlined_call_operand.vmem [shape: f32[1,128], index: 6, kind: input, shape index: {}]
  %s7 = inlined_call_operand.vmem [shape: f32[32,4], index: 7, kind: input, shape index: {}]
  %s8 = inlined_call_operand.vmem [shape: f32[1,4], index: 8, kind: input, shape index: {}]
  %s9 = inlined_call_operand.vmem [shape: f32[256,4], index: 9, kind: input, shape index: {}]
  %s10 = inlined_call_operand.vmem [shape: f32[1,4], index: 10, kind: input, shape index: {}]
  %s11 = inlined_call_operand.vmem [shape: f32[8,2,4], index: 11, kind: output, shape index: {0}]
  %s12 = inlined_call_operand.hbm [shape: f32[2,4], index: 12, kind: output, shape index: {1}]
  %13 = xla_tuple %s11, %s12
  %s14 = sld [smem:[#allocation0]]
  $region62: #{lstm_decoder_forward.1} parent=0
    _
  %s16 = ssub.s32 1, %s14
  %s17 = scalar_select 0, %s16, %s14
  $region1: #{lstm_decoder_forward.1} parent=0
    #allocation2 [shape = 'u8[1024]{0}', space=vmem, size = 0x400, scoped, tag = 'output window, operand 1, single buffered']
    #allocation3 [shape = 's32[1]{0}', space=sflag, size = 0x4, scoped, tag = 'scoped memory for lstm_decoder_forward.1']
    %18 = vsyncpa [#allocation3], 0
    // Predicated region
    $region2: #{lstm_decoder_forward.1} parent=1 // pred_check
      _
    $region3: #{lstm_decoder_forward.1} parent=1 // pred_check_branch
      %20 = sbr.rel (0) target = $region5
    $region4: #{lstm_decoder_forward.1} parent=1 // pred_region
      _
    $region5: #{lstm_decoder_forward.1} parent=1 // pred_fallthru
      _
    // Predicated region
    $region6: #{lstm_decoder_forward.1} parent=1 // pred_check
      _
    $region7: #{lstm_decoder_forward.1} parent=1 // pred_check_branch
      %22 = sbr.rel (0) target = $region9
    $region8: #{lstm_decoder_forward.1} parent=1 // pred_region
      _
    $region9: #{lstm_decoder_forward.1} parent=1 // pred_fallthru
      _
    // Predicated region
    $region10: #{lstm_decoder_forward.1} parent=1 // pred_check
      _
    $region11: #{lstm_decoder_forward.1} parent=1 // pred_check_branch
      %24 = sbr.rel (0) target = $region13
    $region12: #{lstm_decoder_forward.1} parent=1 // pred_region
      _
    $region13: #{lstm_decoder_forward.1} parent=1 // pred_fallthru
      _
    // Predicated region
    $region14: #{lstm_decoder_forward.1} parent=1 // pred_check
      _
    $region15: #{lstm_decoder_forward.1} parent=1 // pred_check_branch
      %26 = sbr.rel (0) target = $region17
    $region16: #{lstm_decoder_forward.1} parent=1 // pred_region
      _
    $region17: #{lstm_decoder_forward.1} parent=1 // pred_fallthru
      _
    // Predicated region
    $region18: #{lstm_decoder_forward.1} parent=1 // pred_check
      _
    $region19: #{lstm_decoder_forward.1} parent=1 // pred_check_branch
      %28 = sbr.rel (0) target = $region21
    $region20: #{lstm_decoder_forward.1} parent=1 // pred_region
      _
    $region21: #{lstm_decoder_forward.1} parent=1 // pred_fallthru
      _
    // Predicated region
    $region22: #{lstm_decoder_forward.1} parent=1 // pred_check
      _
    $region23: #{lstm_decoder_forward.1} parent=1 // pred_check_branch
      %30 = sbr.rel (0) target = $region25
    $region24: #{lstm_decoder_forward.1} parent=1 // pred_region
      _
    $region25: #{lstm_decoder_forward.1} parent=1 // pred_fallthru
      _
    // Predicated region
    $region26: #{lstm_decoder_forward.1} parent=1 // pred_check
      _
    $region27: #{lstm_decoder_forward.1} parent=1 // pred_check_branch
      %32 = sbr.rel (0) target = $region29
    $region28: #{lstm_decoder_forward.1} parent=1 // pred_region
      _
    $region29: #{lstm_decoder_forward.1} parent=1 // pred_fallthru
      _
    // Predicated region
    $region30: #{lstm_decoder_forward.1} parent=1 // pred_check
      _
    $region31: #{lstm_decoder_forward.1} parent=1 // pred_check_branch
      %34 = sbr.rel (0) target = $region33
    $region32: #{lstm_decoder_forward.1} parent=1 // pred_region
      _
    $region33: #{lstm_decoder_forward.1} parent=1 // pred_fallthru
      _
    // Predicated region
    $region34: #{lstm_decoder_forward.1} parent=1 // pred_check
      _
    $region35: #{lstm_decoder_forward.1} parent=1 // pred_check_branch
      %36 = sbr.rel (0) target = $region37
    $region36: #{lstm_decoder_forward.1} parent=1 // pred_region
      _
    $region37: #{lstm_decoder_forward.1} parent=1 // pred_fallthru
      _
    // Predicated region
    $region38: #{lstm_decoder_forward.1} parent=1 // pred_check
      _
    $region39: #{lstm_decoder_forward.1} parent=1 // pred_check_branch
      %38 = sbr.rel (0) target = $region41
    $region40: #{lstm_decoder_forward.1} parent=1 // pred_region
      _
    $region41: #{lstm_decoder_forward.1} parent=1 // pred_fallthru
      _
    // Predicated region
    $region42: #{lstm_decoder_forward.1} parent=1 // pred_check
      _
    $region43: #{lstm_decoder_forward.1} parent=1 // pred_check_branch
      %40 = sbr.rel (0) target = $region45
    $region44: #{lstm_decoder_forward.1} parent=1 // pred_region
      _
    $region45: #{lstm_decoder_forward.1} parent=1 // pred_fallthru
      _
    %v42 = vld [vmem:[%s0] sm:$0x3]
    %v43 = vpack.c.bf16 %v42, %v42
    %v44 = vld [vmem:[%s1] sm:$0xf]
    %v45 = vld [vmem:[%s2] sm:$0x1]
    %v47 = vlaneseq
    %v48 = vshrl.u32 %v47, 7
    %v49 = vsub.s32 0, %v48
    %v50 = vrot.slane %v45, %v49
    %vm52 = vcmask 64512
    %v54 = vsel %vm52, %v43, 0
    %vm56 = vcmask 1043456
    %v58 = vsel %vm56, %v44, 0
    %60 = vmatprep.subr.bf16.mxu0 0
    %61 = vmatpush1.bf16.msra.mxu0 %v58
    %62 = vmatprep.subr.bf16.mxu0 0
    %63 = vmatpush1.bf16.msra.mxu0 0
    %64 = vmatprep.subr.bf16.mxu0 0
    %65 = vmatpush1.bf16.msra.mxu0 0
    %66 = vmatprep.subr.bf16.mxu0 0
    %67 = vmatpush1.bf16.msra.mxu0 0
    %68 = vmatprep.subr.bf16.mxu0 0
    %69 = vmatpush1.bf16.msra.mxu0 0
    %70 = vmatprep.subr.bf16.mxu0 0
    %71 = vmatpush1.bf16.msra.mxu0 0
    %72 = vmatprep.subr.bf16.mxu0 0
    %73 = vmatpush1.bf16.msra.mxu0 0
    %74 = vmatprep.subr.bf16.mxu0 0
    %75 = vmatpush1.bf16.msra.mxu0 0
    %76 = vmatprep.subr.bf16.mxu0 0
    %77 = vmatpush1.bf16.msra.mxu0 0
    %78 = vmatprep.subr.bf16.mxu0 0
    %79 = vmatpush1.bf16.msra.mxu0 0
    %80 = vmatprep.subr.bf16.mxu0 0
    %81 = vmatpush1.bf16.msra.mxu0 0
    %82 = vmatprep.subr.bf16.mxu0 0
    %83 = vmatpush1.bf16.msra.mxu0 0
    %84 = vmatprep.subr.bf16.mxu0 0
    %85 = vmatpush1.bf16.msra.mxu0 0
    %86 = vmatprep.subr.bf16.mxu0 0
    %87 = vmatpush1.bf16.msra.mxu0 0
    %88 = vmatprep.subr.bf16.mxu0 0
    %89 = vmatpush1.bf16.msra.mxu0 0
    %90 = vmatprep.subr.bf16.mxu0 0
    %91 = vmatpush1.bf16.msra.mxu0 0
    %92 = vmatprep.mubr.bf16.mxu0 0
    %93 = vmatmul.mubr.bf16.gmra.mrb[0].mxu0 %v54
    %v94 = vpop.f32.mrb[0].mxu0
    %v95 = vadd.f32 %v50, %v94
    %v96 = vpop.f32.mrb[0].mxu0
    %v97 = vpop.f32.mrb[0].mxu0
    %v98 = vpop.f32.mrb[0].mxu0
    %99 = vdwg.mxu0
    %v100 = vld [vmem:[%s3] sm:$0xf]
    %v101 = vld [vmem:[%s3 + $0x4] sm:$0xf]
    %v102 = vld [vmem:[%s3 + $0x8] sm:$0xf]
    %v103 = vld [vmem:[%s3 + $0xc] sm:$0xf]
    %v104 = vld [vmem:[%s4] sm:$0xf]
    %v105 = vld [vmem:[%s4 + $0x4] sm:$0xf]
    %v106 = vld [vmem:[%s4 + $0x8] sm:$0xf]
    %v107 = vld [vmem:[%s4 + $0xc] sm:$0xf]
    %v108 = vld [vmem:[%s7] sm:$0xff]
    %v109 = vld [vmem:[%s7 + $0x8] sm:$0xff]
    %v110 = vld [vmem:[%s7 + $0x10] sm:$0xff]
    %v111 = vld [vmem:[%s7 + $0x18] sm:$0xff]
    %v112 = vld [vmem:[%s5] sm:$0x1]
    %v114 = vlaneseq
    %v115 = vshrl.u32 %v114, 7
    %v116 = vsub.s32 0, %v115
    %v117 = vrot.slane %v112, %v116
    %v119 = vld [vmem:[%s6] sm:$0x1]
    %v121 = vlaneseq
    %v122 = vshrl.u32 %v121, 7
    %v123 = vsub.s32 0, %v122
    %v124 = vrot.slane %v119, %v123
    %v126 = vld [vmem:[%s8] sm:$0x1]
    %v128 = vlaneseq
    %v129 = vshrl.u32 %v128, 7
    %v130 = vsub.s32 0, %v129
    %v131 = vrot.slane %v126, %v130
    %v133 = vld [vmem:[%s10] sm:$0x1]
    %v135 = vlaneseq
    %v136 = vshrl.u32 %v135, 7
    %v137 = vsub.s32 0, %v136
    %v138 = vrot.slane %v133, %v137
    %v140 = vpack.c.bf16 %v95, %v95
    %v145 = vunpack.c.l.b16 %v104
    %v146 = vunpack.c.l.b16 %v105
    %v147 = vunpack.c.l.b16 %v106
    %v148 = vunpack.c.l.b16 %v107
    %v149 = vpack.c.b16 %v146, %v145
    %v150 = vpack.c.b16 %v148, %v147
    %vm153 = vcmask 261120
    %v155 = vsel %vm153, %v140, 0
    %157 = vmatprep.subr.bf16.mxu0 0
    %158 = vmatpush1.bf16.msra.mxu0 %v149
    %159 = vmatprep.subr.bf16.mxu0 0
    %160 = vmatpush1.bf16.msra.mxu0 %v150
    %161 = vmatprep.subr.bf16.mxu0 0
    %162 = vmatpush1.bf16.msra.mxu0 0
    %163 = vmatprep.subr.bf16.mxu0 0
    %164 = vmatpush1.bf16.msra.mxu0 0
    %165 = vmatprep.subr.bf16.mxu0 0
    %166 = vmatpush1.bf16.msra.mxu0 0
    %167 = vmatprep.subr.bf16.mxu0 0
    %168 = vmatpush1.bf16.msra.mxu0 0
    %169 = vmatprep.subr.bf16.mxu0 0
    %170 = vmatpush1.bf16.msra.mxu0 0
    %171 = vmatprep.subr.bf16.mxu0 0
    %172 = vmatpush1.bf16.msra.mxu0 0
    %173 = vmatprep.subr.bf16.mxu0 0
    %174 = vmatpush1.bf16.msra.mxu0 0
    %175 = vmatprep.subr.bf16.mxu0 0
    %176 = vmatpush1.bf16.msra.mxu0 0
    %177 = vmatprep.subr.bf16.mxu0 0
    %178 = vmatpush1.bf16.msra.mxu0 0
    %179 = vmatprep.subr.bf16.mxu0 0
    %180 = vmatpush1.bf16.msra.mxu0 0
    %181 = vmatprep.subr.bf16.mxu0 0
    %182 = vmatpush1.bf16.msra.mxu0 0
    %183 = vmatprep.subr.bf16.mxu0 0
    %184 = vmatpush1.bf16.msra.mxu0 0
    %185 = vmatprep.subr.bf16.mxu0 0
    %186 = vmatpush1.bf16.msra.mxu0 0
    %187 = vmatprep.subr.bf16.mxu0 0
    %188 = vmatpush1.bf16.msra.mxu0 0
    %189 = vmatprep.mubr.bf16.mxu0 0
    %190 = vmatmul.mubr.bf16.gmra.mrb[0].mxu0 %v155
    %v191 = vpop.f32.mrb[0].mxu0
    %v192 = vadd.f32 %v117, %v191
    %v193 = vpop.f32.mrb[0].mxu0
    %v194 = vpop.f32.mrb[0].mxu0
    %v195 = vpop.f32.mrb[0].mxu0
    %196 = vdwg.mxu0
    %v197 = vxor.u32 %v192, 2147483648
    %v198 = vmul.f32 %v197, 1.442695
    %v199 = vpow.pop %v198
    %v200 = vadd.f32 %v199, 1.0
    %v201 = vrcp.pop %v200
    %v202 = vmul.f32 1.0, %v201
    %v203 = vtanh.pop %v192
    %v204 = vmul.f32 %v202, %v95
    %206 = vrot.lane.b32.xlu0 %v203, 64
    %v207 = vpop.permute.xlu0 %206
    %v209 = vmul.f32 %v202, %v207
    %211 = vrot.lane.b32.xlu0 %v209, 32
    %v212 = vpop.permute.xlu0 %211
    %v214 = vadd.f32 %v204, %v212
    %v215 = vtanh.pop %v214
    %217 = vrot.lane.b32.xlu0 %v215, 64
    %v218 = vpop.permute.xlu0 %217
    %v220 = vmul.f32 %v202, %v218
    %v221 = vtanh.pop %v220
    %223 = vrot.lane.b32.xlu0 %v221, 32
    %v224 = vpop.permute.xlu0 %223
    %v225 = vsel %vm153, %v224, 0
    %227 = vmatprep.subr.mxu0 0.0
    %228 = vmatpush1.msra.mxu0 %v108
    %229 = vmatprep.subr.mxu0 0.0
    %230 = vmatpush1.msra.mxu0 %v109
    %231 = vmatprep.subr.mxu0 0.0
    %232 = vmatpush1.msra.mxu0 %v110
    %233 = vmatprep.subr.mxu0 0.0
    %234 = vmatpush1.msra.mxu0 %v111
    %235 = vmatprep.subr.mxu0 0.0
    %236 = vmatpush1.msra.mxu0 0.0
    %237 = vmatprep.subr.mxu0 0.0
    %238 = vmatpush1.msra.mxu0 0.0
    %239 = vmatprep.subr.mxu0 0.0
    %240 = vmatpush1.msra.mxu0 0.0
    %241 = vmatprep.subr.mxu0 0.0
    %242 = vmatpush1.msra.mxu0 0.0
    %243 = vmatprep.subr.mxu0 0.0
    %244 = vmatpush1.msra.mxu0 0.0
    %245 = vmatprep.subr.mxu0 0.0
    %246 = vmatpush1.msra.mxu0 0.0
    %247 = vmatprep.subr.mxu0 0.0
    %248 = vmatpush1.msra.mxu0 0.0
    %249 = vmatprep.subr.mxu0 0.0
    %250 = vmatpush1.msra.mxu0 0.0
    %251 = vmatprep.subr.mxu0 0.0
    %252 = vmatpush1.msra.mxu0 0.0
    %253 = vmatprep.subr.mxu0 0.0
    %254 = vmatpush1.msra.mxu0 0.0
    %255 = vmatprep.subr.mxu0 0.0
    %256 = vmatpush1.msra.mxu0 0.0
    %257 = vmatprep.subr.mxu0 0.0
    %258 = vmatpush1.msra.mxu0 0.0
    %259 = vmatprep.subr.mxu0 0.0
    %260 = vmatpush1.msra.mxu0 0.0
    %261 = vmatprep.subr.mxu0 0.0
    %262 = vmatpush1.msra.mxu0 0.0
    %263 = vmatprep.subr.mxu0 0.0
    %264 = vmatpush1.msra.mxu0 0.0
    %265 = vmatprep.subr.mxu0 0.0
    %266 = vmatpush1.msra.mxu0 0.0
    %267 = vmatprep.subr.mxu0 0.0
    %268 = vmatpush1.msra.mxu0 0.0
    %269 = vmatprep.subr.mxu0 0.0
    %270 = vmatpush1.msra.mxu0 0.0
    %271 = vmatprep.subr.mxu0 0.0
    %272 = vmatpush1.msra.mxu0 0.0
    %273 = vmatprep.subr.mxu0 0.0
    %274 = vmatpush1.msra.mxu0 0.0
    %275 = vmatprep.subr.mxu0 0.0
    %276 = vmatpush1.msra.mxu0 0.0
    %277 = vmatprep.subr.mxu0 0.0
    %278 = vmatpush1.msra.mxu0 0.0
    %279 = vmatprep.subr.mxu0 0.0
    %280 = vmatpush1.msra.mxu0 0.0
    %281 = vmatprep.subr.mxu0 0.0
    %282 = vmatpush1.msra.mxu0 0.0
    %283 = vmatprep.subr.mxu0 0.0
    %284 = vmatpush1.msra.mxu0 0.0
    %285 = vmatprep.subr.mxu0 0.0
    %286 = vmatpush1.msra.mxu0 0.0
    %287 = vmatprep.subr.mxu0 0.0
    %288 = vmatpush1.msra.mxu0 0.0
    %289 = vmatprep.subr.mxu0 0.0
    %290 = vmatpush1.msra.mxu0 0.0
    %291 = vmatprep.mubr.f32.mxu0 0.0
    %292 = vmatmul.mubr.f32.gmra.mrb[0].mxu0 %v225
    %v293 = vpop.f32.mrb[0].mxu0
    %v294 = vadd.f32 %v131, %v293
    %v295 = vpop.f32.mrb[0].mxu0
    %296 = vdwg.mxu0
    %vm297 = vcmask 25600
    %298 = vst.msk [vmem:[%s11] sm:$0x3] %vm297, %v294
    %v299 = vld [vmem:[%s9] sm:$0xff]
    %v300 = vld [vmem:[%s9 + $0x8] sm:$0xff]
    %v301 = vld [vmem:[%s9 + $0x10] sm:$0xff]
    %v302 = vld [vmem:[%s9 + $0x18] sm:$0xff]
    %304 = vrot.lane.b32.xlu0 %v220, 32
    %v305 = vpop.permute.xlu0 %304
    %v306 = vsel %vm153, %v305, 0
    %308 = vmatprep.subr.mxu0 0.0
    %309 = vmatpush1.msra.mxu0 %v299
    %310 = vmatprep.subr.mxu0 0.0
    %311 = vmatpush1.msra.mxu0 %v300
    %312 = vmatprep.subr.mxu0 0.0
    %313 = vmatpush1.msra.mxu0 %v301
    %314 = vmatprep.subr.mxu0 0.0
    %315 = vmatpush1.msra.mxu0 %v302
    %316 = vmatprep.subr.mxu0 0.0
    %317 = vmatpush1.msra.mxu0 0.0
    %318 = vmatprep.subr.mxu0 0.0
    %319 = vmatpush1.msra.mxu0 0.0
    %320 = vmatprep.subr.mxu0 0.0
    %321 = vmatpush1.msra.mxu0 0.0
    %322 = vmatprep.subr.mxu0 0.0
    %323 = vmatpush1.msra.mxu0 0.0
    %324 = vmatprep.subr.mxu0 0.0
    %325 = vmatpush1.msra.mxu0 0.0
    %326 = vmatprep.subr.mxu0 0.0
    %327 = vmatpush1.msra.mxu0 0.0
    %328 = vmatprep.subr.mxu0 0.0
    %329 = vmatpush1.msra.mxu0 0.0
    %330 = vmatprep.subr.mxu0 0.0
    %331 = vmatpush1.msra.mxu0 0.0
    %332 = vmatprep.subr.mxu0 0.0
    %333 = vmatpush1.msra.mxu0 0.0
    %334 = vmatprep.subr.mxu0 0.0
    %335 = vmatpush1.msra.mxu0 0.0
    %336 = vmatprep.subr.mxu0 0.0
    %337 = vmatpush1.msra.mxu0 0.0
    %338 = vmatprep.subr.mxu0 0.0
    %339 = vmatpush1.msra.mxu0 0.0
    %340 = vmatprep.subr.mxu0 0.0
    %341 = vmatpush1.msra.mxu0 0.0
    %342 = vmatprep.subr.mxu0 0.0
    %343 = vmatpush1.msra.mxu0 0.0
    %344 = vmatprep.subr.mxu0 0.0
    %345 = vmatpush1.msra.mxu0 0.0
    %346 = vmatprep.subr.mxu0 0.0
    %347 = vmatpush1.msra.mxu0 0.0
    %348 = vmatprep.subr.mxu0 0.0
    %349 = vmatpush1.msra.mxu0 0.0
    %350 = vmatprep.subr.mxu0 0.0
    %351 = vmatpush1.msra.mxu0 0.0
    %352 = vmatprep.subr.mxu0 0.0
    %353 = vmatpush1.msra.mxu0 0.0
    %354 = vmatprep.subr.mxu0 0.0
    %355 = vmatpush1.msra.mxu0 0.0
    %356 = vmatprep.subr.mxu0 0.0
    %357 = vmatpush1.msra.mxu0 0.0
    %358 = vmatprep.subr.mxu0 0.0
    %359 = vmatpush1.msra.mxu0 0.0
    %360 = vmatprep.subr.mxu0 0.0
    %361 = vmatpush1.msra.mxu0 0.0
    %362 = vmatprep.subr.mxu0 0.0
    %363 = vmatpush1.msra.mxu0 0.0
    %364 = vmatprep.subr.mxu0 0.0
    %365 = vmatpush1.msra.mxu0 0.0
    %366 = vmatprep.subr.mxu0 0.0
    %367 = vmatpush1.msra.mxu0 0.0
    %368 = vmatprep.subr.mxu0 0.0
    %369 = vmatpush1.msra.mxu0 0.0
    %370 = vmatprep.subr.mxu0 0.0
    %371 = vmatpush1.msra.mxu0 0.0
    %372 = vmatprep.mubr.f32.mxu0 0.0
    %373 = vmatmul.mubr.f32.gmra.mrb[0].mxu0 %v306
    %v374 = vpop.f32.mrb[0].mxu0
    %v375 = vadd.f32 0.0, %v374
    %v376 = vpop.f32.mrb[0].mxu0
    %377 = vdwg.mxu0
    %v378 = vadd.f32 %v138, %v375
    %v379 = vpack.c.bf16 %v221, %v221
    %v380 = vpack.c.bf16 %v220, %v220
    %382 = vrot.lane.b32.xlu0 %v380, 32
    %v383 = vpop.permute.xlu0 %382
    %v385 = vsel %vm153, %v383, 0
    %387 = vmatprep.subr.bf16.mxu0 0
    %388 = vmatpush1.bf16.msra.mxu0 %v149
    %389 = vmatprep.subr.bf16.mxu0 0
    %390 = vmatpush1.bf16.msra.mxu0 %v150
    %391 = vmatprep.subr.bf16.mxu0 0
    %392 = vmatpush1.bf16.msra.mxu0 0
    %393 = vmatprep.subr.bf16.mxu0 0
    %394 = vmatpush1.bf16.msra.mxu0 0
    %395 = vmatprep.subr.bf16.mxu0 0
    %396 = vmatpush1.bf16.msra.mxu0 0
    %397 = vmatprep.subr.bf16.mxu0 0
    %398 = vmatpush1.bf16.msra.mxu0 0
    %399 = vmatprep.subr.bf16.mxu0 0
    %400 = vmatpush1.bf16.msra.mxu0 0
    %401 = vmatprep.subr.bf16.mxu0 0
    %402 = vmatpush1.bf16.msra.mxu0 0
    %403 = vmatprep.subr.bf16.mxu0 0
    %404 = vmatpush1.bf16.msra.mxu0 0
    %405 = vmatprep.subr.bf16.mxu0 0
    %406 = vmatpush1.bf16.msra.mxu0 0
    %407 = vmatprep.subr.bf16.mxu0 0
    %408 = vmatpush1.bf16.msra.mxu0 0
    %409 = vmatprep.subr.bf16.mxu0 0
    %410 = vmatpush1.bf16.msra.mxu0 0
    %411 = vmatprep.subr.bf16.mxu0 0
    %412 = vmatpush1.bf16.msra.mxu0 0
    %413 = vmatprep.subr.bf16.mxu0 0
    %414 = vmatpush1.bf16.msra.mxu0 0
    %415 = vmatprep.subr.bf16.mxu0 0
    %416 = vmatpush1.bf16.msra.mxu0 0
    %417 = vmatprep.subr.bf16.mxu0 0
    %418 = vmatpush1.bf16.msra.mxu0 0
    %419 = vmatprep.mubr.bf16.mxu0 0
    %420 = vmatmul.mubr.bf16.gmra.mrb[0].mxu0 %v385
    %v421 = vpop.f32.mrb[0].mxu0
    %v422 = vadd.f32 0.0, %v421
    %v423 = vpop.f32.mrb[0].mxu0
    %v424 = vpop.f32.mrb[0].mxu0
    %v425 = vpop.f32.mrb[0].mxu0
    %426 = vdwg.mxu0
    %428 = vrot.lane.b32.xlu0 %v379, 32
    %v429 = vpop.permute.xlu0 %428
    %v434 = vunpack.c.l.b16 %v100
    %v435 = vunpack.c.l.b16 %v101
    %v436 = vunpack.c.l.b16 %v102
    %v437 = vunpack.c.l.b16 %v103
    %v438 = vpack.c.b16 %v435, %v434
    %v439 = vpack.c.b16 %v437, %v436
    %v443 = vsel %vm153, %v429, 0
    %445 = vmatprep.subr.bf16.mxu0 0
    %446 = vmatpush1.bf16.msra.mxu0 %v438
    %447 = vmatprep.subr.bf16.mxu0 0
    %448 = vmatpush1.bf16.msra.mxu0 %v439
    %449 = vmatprep.subr.bf16.mxu0 0
    %450 = vmatpush1.bf16.msra.mxu0 0
    %451 = vmatprep.subr.bf16.mxu0 0
    %452 = vmatpush1.bf16.msra.mxu0 0
    %453 = vmatprep.subr.bf16.mxu0 0
    %454 = vmatpush1.bf16.msra.mxu0 0
    %455 = vmatprep.subr.bf16.mxu0 0
    %456 = vmatpush1.bf16.msra.mxu0 0
    %457 = vmatprep.subr.bf16.mxu0 0
    %458 = vmatpush1.bf16.msra.mxu0 0
    %459 = vmatprep.subr.bf16.mxu0 0
    %460 = vmatpush1.bf16.msra.mxu0 0
    %461 = vmatprep.subr.bf16.mxu0 0
    %462 = vmatpush1.bf16.msra.mxu0 0
    %463 = vmatprep.subr.bf16.mxu0 0
    %464 = vmatpush1.bf16.msra.mxu0 0
    %465 = vmatprep.subr.bf16.mxu0 0
    %466 = vmatpush1.bf16.msra.mxu0 0
    %467 = vmatprep.subr.bf16.mxu0 0
    %468 = vmatpush1.bf16.msra.mxu0 0
    %469 = vmatprep.subr.bf16.mxu0 0
    %470 = vmatpush1.bf16.msra.mxu0 0
    %471 = vmatprep.subr.bf16.mxu0 0
    %472 = vmatpush1.bf16.msra.mxu0 0
    %473 = vmatprep.subr.bf16.mxu0 0
    %474 = vmatpush1.bf16.msra.mxu0 0
    %475 = vmatprep.subr.bf16.mxu0 0
    %476 = vmatpush1.bf16.msra.mxu0 0
    %477 = vmatprep.mubr.bf16.mxu0 0
    %478 = vmatmul.mubr.bf16.gmra.mrb[0].mxu0 %v443
    %v479 = vpop.f32.mrb[0].mxu0
    %v480 = vadd.f32 %v422, %v479
    %v481 = vpop.f32.mrb[0].mxu0
    %v482 = vpop.f32.mrb[0].mxu0
    %v483 = vpop.f32.mrb[0].mxu0
    %484 = vdwg.mxu0
    %v485 = vadd.f32 %v480, %v124
    %v486 = vxor.u32 %v485, 2147483648
    %v487 = vmul.f32 %v486, 1.442695
    %v488 = vpow.pop %v487
    %v489 = vadd.f32 %v488, 1.0
    %v490 = vrcp.pop %v489
    %v491 = vmul.f32 1.0, %v490
    %v492 = vtanh.pop %v485
    %v493 = vmul.f32 %v491, %v214
    %495 = vrot.lane.b32.xlu0 %v492, 64
    %v496 = vpop.permute.xlu0 %495
    %v498 = vmul.f32 %v491, %v496
    %500 = vrot.lane.b32.xlu0 %v498, 32
    %v501 = vpop.permute.xlu0 %500
    %v503 = vadd.f32 %v493, %v501
    %v504 = vtanh.pop %v503
    %506 = vrot.lane.b32.xlu0 %v504, 64
    %v507 = vpop.permute.xlu0 %506
    %v509 = vmul.f32 %v491, %v507
    %v510 = vtanh.pop %v509
    %512 = vrot.lane.b32.xlu0 %v510, 32
    %v513 = vpop.permute.xlu0 %512
    %v514 = vsel %vm153, %v513, 0
    %516 = vmatprep.subr.mxu0 0.0
    %517 = vmatpush1.msra.mxu0 %v108
    %518 = vmatprep.subr.mxu0 0.0
    %519 = vmatpush1.msra.mxu0 %v109
    %520 = vmatprep.subr.mxu0 0.0
    %521 = vmatpush1.msra.mxu0 %v110
    %522 = vmatprep.subr.mxu0 0.0
    %523 = vmatpush1.msra.mxu0 %v111
    %524 = vmatprep.subr.mxu0 0.0
    %525 = vmatpush1.msra.mxu0 0.0
    %526 = vmatprep.subr.mxu0 0.0
    %527 = vmatpush1.msra.mxu0 0.0
    %528 = vmatprep.subr.mxu0 0.0
    %529 = vmatpush1.msra.mxu0 0.0
    %530 = vmatprep.subr.mxu0 0.0
    %531 = vmatpush1.msra.mxu0 0.0
    %532 = vmatprep.subr.mxu0 0.0
    %533 = vmatpush1.msra.mxu0 0.0
    %534 = vmatprep.subr.mxu0 0.0
    %535 = vmatpush1.msra.mxu0 0.0
    %536 = vmatprep.subr.mxu0 0.0
    %537 = vmatpush1.msra.mxu0 0.0
    %538 = vmatprep.subr.mxu0 0.0
    %539 = vmatpush1.msra.mxu0 0.0
    %540 = vmatprep.subr.mxu0 0.0
    %541 = vmatpush1.msra.mxu0 0.0
    %542 = vmatprep.subr.mxu0 0.0
    %543 = vmatpush1.msra.mxu0 0.0
    %544 = vmatprep.subr.mxu0 0.0
    %545 = vmatpush1.msra.mxu0 0.0
    %546 = vmatprep.subr.mxu0 0.0
    %547 = vmatpush1.msra.mxu0 0.0
    %548 = vmatprep.subr.mxu0 0.0
    %549 = vmatpush1.msra.mxu0 0.0
    %550 = vmatprep.subr.mxu0 0.0
    %551 = vmatpush1.msra.mxu0 0.0
    %552 = vmatprep.subr.mxu0 0.0
    %553 = vmatpush1.msra.mxu0 0.0
    %554 = vmatprep.subr.mxu0 0.0
    %555 = vmatpush1.msra.mxu0 0.0
    %556 = vmatprep.subr.mxu0 0.0
    %557 = vmatpush1.msra.mxu0 0.0
    %558 = vmatprep.subr.mxu0 0.0
    %559 = vmatpush1.msra.mxu0 0.0
    %560 = vmatprep.subr.mxu0 0.0
    %561 = vmatpush1.msra.mxu0 0.0
    %562 = vmatprep.subr.mxu0 0.0
    %563 = vmatpush1.msra.mxu0 0.0
    %564 = vmatprep.subr.mxu0 0.0
    %565 = vmatpush1.msra.mxu0 0.0
    %566 = vmatprep.subr.mxu0 0.0
    %567 = vmatpush1.msra.mxu0 0.0
    %568 = vmatprep.subr.mxu0 0.0
    %569 = vmatpush1.msra.mxu0 0.0
    %570 = vmatprep.subr.mxu0 0.0
    %571 = vmatpush1.msra.mxu0 0.0
    %572 = vmatprep.subr.mxu0 0.0
    %573 = vmatpush1.msra.mxu0 0.0
    %574 = vmatprep.subr.mxu0 0.0
    %575 = vmatpush1.msra.mxu0 0.0
    %576 = vmatprep.subr.mxu0 0.0
    %577 = vmatpush1.msra.mxu0 0.0
    %578 = vmatprep.subr.mxu0 0.0
    %579 = vmatpush1.msra.mxu0 0.0
    %580 = vmatprep.mubr.f32.mxu0 0.0
    %581 = vmatmul.mubr.f32.gmra.mrb[0].mxu0 %v514
    %v582 = vpop.f32.mrb[0].mxu0
    %v583 = vadd.f32 %v131, %v582
    %v584 = vpop.f32.mrb[0].mxu0
    %585 = vdwg.mxu0
    %s586 = scalar_lea.vmem %s11, 2
    %587 = vst.msk [vmem:[%s586] sm:$0x3] %vm297, %v583
    %v588 = vld [vmem:[%s9 + $0x20] sm:$0xff]
    %v589 = vld [vmem:[%s9 + $0x28] sm:$0xff]
    %v590 = vld [vmem:[%s9 + $0x30] sm:$0xff]
    %v591 = vld [vmem:[%s9 + $0x38] sm:$0xff]
    %593 = vrot.lane.b32.xlu0 %v509, 32
    %v594 = vpop.permute.xlu0 %593
    %v595 = vsel %vm153, %v594, 0
    %597 = vmatprep.subr.mxu0 0.0
    %598 = vmatpush1.msra.mxu0 %v588
    %599 = vmatprep.subr.mxu0 0.0
    %600 = vmatpush1.msra.mxu0 %v589
    %601 = vmatprep.subr.mxu0 0.0
    %602 = vmatpush1.msra.mxu0 %v590
    %603 = vmatprep.subr.mxu0 0.0
    %604 = vmatpush1.msra.mxu0 %v591
    %605 = vmatprep.subr.mxu0 0.0
    %606 = vmatpush1.msra.mxu0 0.0
    %607 = vmatprep.subr.mxu0 0.0
    %608 = vmatpush1.msra.mxu0 0.0
    %609 = vmatprep.subr.mxu0 0.0
    %610 = vmatpush1.msra.mxu0 0.0
    %611 = vmatprep.subr.mxu0 0.0
    %612 = vmatpush1.msra.mxu0 0.0
    %613 = vmatprep.subr.mxu0 0.0
    %614 = vmatpush1.msra.mxu0 0.0
    %615 = vmatprep.subr.mxu0 0.0
    %616 = vmatpush1.msra.mxu0 0.0
    %617 = vmatprep.subr.mxu0 0.0
    %618 = vmatpush1.msra.mxu0 0.0
    %619 = vmatprep.subr.mxu0 0.0
    %620 = vmatpush1.msra.mxu0 0.0
    %621 = vmatprep.subr.mxu0 0.0
    %622 = vmatpush1.msra.mxu0 0.0
    %623 = vmatprep.subr.mxu0 0.0
    %624 = vmatpush1.msra.mxu0 0.0
    %625 = vmatprep.subr.mxu0 0.0
    %626 = vmatpush1.msra.mxu0 0.0
    %627 = vmatprep.subr.mxu0 0.0
    %628 = vmatpush1.msra.mxu0 0.0
    %629 = vmatprep.subr.mxu0 0.0
    %630 = vmatpush1.msra.mxu0 0.0
    %631 = vmatprep.subr.mxu0 0.0
    %632 = vmatpush1.msra.mxu0 0.0
    %633 = vmatprep.subr.mxu0 0.0
    %634 = vmatpush1.msra.mxu0 0.0
    %635 = vmatprep.subr.mxu0 0.0
    %636 = vmatpush1.msra.mxu0 0.0
    %637 = vmatprep.subr.mxu0 0.0
    %638 = vmatpush1.msra.mxu0 0.0
    %639 = vmatprep.subr.mxu0 0.0
    %640 = vmatpush1.msra.mxu0 0.0
    %641 = vmatprep.subr.mxu0 0.0
    %642 = vmatpush1.msra.mxu0 0.0
    %643 = vmatprep.subr.mxu0 0.0
    %644 = vmatpush1.msra.mxu0 0.0
    %645 = vmatprep.subr.mxu0 0.0
    %646 = vmatpush1.msra.mxu0 0.0
    %647 = vmatprep.subr.mxu0 0.0
    %648 = vmatpush1.msra.mxu0 0.0
    %649 = vmatprep.subr.mxu0 0.0
    %650 = vmatpush1.msra.mxu0 0.0
    %651 = vmatprep.subr.mxu0 0.0
    %652 = vmatpush1.msra.mxu0 0.0
    %653 = vmatprep.subr.mxu0 0.0
    %654 = vmatpush1.msra.mxu0 0.0
    %655 = vmatprep.subr.mxu0 0.0
    %656 = vmatpush1.msra.mxu0 0.0
    %657 = vmatprep.subr.mxu0 0.0
    %658 = vmatpush1.msra.mxu0 0.0
    %659 = vmatprep.subr.mxu0 0.0
    %660 = vmatpush1.msra.mxu0 0.0
    %661 = vmatprep.mubr.f32.mxu0 0.0
    %662 = vmatmul.mubr.f32.gmra.mrb[0].mxu0 %v595
    %v663 = vpop.f32.mrb[0].mxu0
    %v664 = vadd.f32 0.0, %v663
    %v665 = vpop.f32.mrb[0].mxu0
    %666 = vdwg.mxu0
    %v667 = vadd.f32 %v378, %v664
    %v668 = vpack.c.bf16 %v510, %v510
    %v669 = vpack.c.bf16 %v509, %v509
    %671 = vrot.lane.b32.xlu0 %v669, 32
    %v672 = vpop.permute.xlu0 %671
    %v674 = vsel %vm153, %v672, 0
    %676 = vmatprep.subr.bf16.mxu0 0
    %677 = vmatpush1.bf16.msra.mxu0 %v149
    %678 = vmatprep.subr.bf16.mxu0 0
    %679 = vmatpush1.bf16.msra.mxu0 %v150
    %680 = vmatprep.subr.bf16.mxu0 0
    %681 = vmatpush1.bf16.msra.mxu0 0
    %682 = vmatprep.subr.bf16.mxu0 0
    %683 = vmatpush1.bf16.msra.mxu0 0
    %684 = vmatprep.subr.bf16.mxu0 0
    %685 = vmatpush1.bf16.msra.mxu0 0
    %686 = vmatprep.subr.bf16.mxu0 0
    %687 = vmatpush1.bf16.msra.mxu0 0
    %688 = vmatprep.subr.bf16.mxu0 0
    %689 = vmatpush1.bf16.msra.mxu0 0
    %690 = vmatprep.subr.bf16.mxu0 0
    %691 = vmatpush1.bf16.msra.mxu0 0
    %692 = vmatprep.subr.bf16.mxu0 0
    %693 = vmatpush1.bf16.msra.mxu0 0
    %694 = vmatprep.subr.bf16.mxu0 0
    %695 = vmatpush1.bf16.msra.mxu0 0
    %696 = vmatprep.subr.bf16.mxu0 0
    %697 = vmatpush1.bf16.msra.mxu0 0
    %698 = vmatprep.subr.bf16.mxu0 0
    %699 = vmatpush1.bf16.msra.mxu0 0
    %700 = vmatprep.subr.bf16.mxu0 0
    %701 = vmatpush1.bf16.msra.mxu0 0
    %702 = vmatprep.subr.bf16.mxu0 0
    %703 = vmatpush1.bf16.msra.mxu0 0
    %704 = vmatprep.subr.bf16.mxu0 0
    %705 = vmatpush1.bf16.msra.mxu0 0
    %706 = vmatprep.subr.bf16.mxu0 0
    %707 = vmatpush1.bf16.msra.mxu0 0
    %708 = vmatprep.mubr.bf16.mxu0 0
    %709 = vmatmul.mubr.bf16.gmra.mrb[0].mxu0 %v674
    %v710 = vpop.f32.mrb[0].mxu0
    %v711 = vadd.f32 0.0, %v710
    %v712 = vpop.f32.mrb[0].mxu0
    %v713 = vpop.f32.mrb[0].mxu0
    %v714 = vpop.f32.mrb[0].mxu0
    %715 = vdwg.mxu0
    %717 = vrot.lane.b32.xlu0 %v668, 32
    %v718 = vpop.permute.xlu0 %717
    %v720 = vsel %vm153, %v718, 0
    %722 = vmatprep.subr.bf16.mxu0 0
    %723 = vmatpush1.bf16.msra.mxu0 %v438
    %724 = vmatprep.subr.bf16.mxu0 0
    %725 = vmatpush1.bf16.msra.mxu0 %v439
    %726 = vmatprep.subr.bf16.mxu0 0
    %727 = vmatpush1.bf16.msra.mxu0 0
    %728 = vmatprep.subr.bf16.mxu0 0
    %729 = vmatpush1.bf16.msra.mxu0 0
    %730 = vmatprep.subr.bf16.mxu0 0
    %731 = vmatpush1.bf16.msra.mxu0 0
    %732 = vmatprep.subr.bf16.mxu0 0
    %733 = vmatpush1.bf16.msra.mxu0 0
    %734 = vmatprep.subr.bf16.mxu0 0
    %735 = vmatpush1.bf16.msra.mxu0 0
    %736 = vmatprep.subr.bf16.mxu0 0
    %737 = vmatpush1.bf16.msra.mxu0 0
    %738 = vmatprep.subr.bf16.mxu0 0
    %739 = vmatpush1.bf16.msra.mxu0 0
    %740 = vmatprep.subr.bf16.mxu0 0
    %741 = vmatpush1.bf16.msra.mxu0 0
    %742 = vmatprep.subr.bf16.mxu0 0
    %743 = vmatpush1.bf16.msra.mxu0 0
    %744 = vmatprep.subr.bf16.mxu0 0
    %745 = vmatpush1.bf16.msra.mxu0 0
    %746 = vmatprep.subr.bf16.mxu0 0
    %747 = vmatpush1.bf16.msra.mxu0 0
    %748 = vmatprep.subr.bf16.mxu0 0
    %749 = vmatpush1.bf16.msra.mxu0 0
    %750 = vmatprep.subr.bf16.mxu0 0
    %751 = vmatpush1.bf16.msra.mxu0 0
    %752 = vmatprep.subr.bf16.mxu0 0
    %753 = vmatpush1.bf16.msra.mxu0 0
    %754 = vmatprep.mubr.bf16.mxu0 0
    %755 = vmatmul.mubr.bf16.gmra.mrb[0].mxu0 %v720
    %v756 = vpop.f32.mrb[0].mxu0
    %v757 = vadd.f32 %v711, %v756
    %v758 = vpop.f32.mrb[0].mxu0
    %v759 = vpop.f32.mrb[0].mxu0
    %v760 = vpop.f32.mrb[0].mxu0
    %761 = vdwg.mxu0
    %v762 = vadd.f32 %v757, %v124
    %v763 = vxor.u32 %v762, 2147483648
    %v764 = vmul.f32 %v763, 1.442695
    %v765 = vpow.pop %v764
    %v766 = vadd.f32 %v765, 1.0
    %v767 = vrcp.pop %v766
    %v768 = vmul.f32 1.0, %v767
    %v769 = vtanh.pop %v762
    %v770 = vmul.f32 %v768, %v503
    %772 = vrot.lane.b32.xlu0 %v769, 64
    %v773 = vpop.permute.xlu0 %772
    %v775 = vmul.f32 %v768, %v773
    %777 = vrot.lane.b32.xlu0 %v775, 32
    %v778 = vpop.permute.xlu0 %777
    %v780 = vadd.f32 %v770, %v778
    %v781 = vtanh.pop %v780
    %783 = vrot.lane.b32.xlu0 %v781, 64
    %v784 = vpop.permute.xlu0 %783
    %v786 = vmul.f32 %v768, %v784
    %v787 = vtanh.pop %v786
    %789 = vrot.lane.b32.xlu0 %v787, 32
    %v790 = vpop.permute.xlu0 %789
    %v791 = vsel %vm153, %v790, 0
    %793 = vmatprep.subr.mxu0 0.0
    %794 = vmatpush1.msra.mxu0 %v108
    %795 = vmatprep.subr.mxu0 0.0
    %796 = vmatpush1.msra.mxu0 %v109
    %797 = vmatprep.subr.mxu0 0.0
    %798 = vmatpush1.msra.mxu0 %v110
    %799 = vmatprep.subr.mxu0 0.0
    %800 = vmatpush1.msra.mxu0 %v111
    %801 = vmatprep.subr.mxu0 0.0
    %802 = vmatpush1.msra.mxu0 0.0
    %803 = vmatprep.subr.mxu0 0.0
    %804 = vmatpush1.msra.mxu0 0.0
    %805 = vmatprep.subr.mxu0 0.0
    %806 = vmatpush1.msra.mxu0 0.0
    %807 = vmatprep.subr.mxu0 0.0
    %808 = vmatpush1.msra.mxu0 0.0
    %809 = vmatprep.subr.mxu0 0.0
    %810 = vmatpush1.msra.mxu0 0.0
    %811 = vmatprep.subr.mxu0 0.0
    %812 = vmatpush1.msra.mxu0 0.0
    %813 = vmatprep.subr.mxu0 0.0
    %814 = vmatpush1.msra.mxu0 0.0
    %815 = vmatprep.subr.mxu0 0.0
    %816 = vmatpush1.msra.mxu0 0.0
    %817 = vmatprep.subr.mxu0 0.0
    %818 = vmatpush1.msra.mxu0 0.0
    %819 = vmatprep.subr.mxu0 0.0
    %820 = vmatpush1.msra.mxu0 0.0
    %821 = vmatprep.subr.mxu0 0.0
    %822 = vmatpush1.msra.mxu0 0.0
    %823 = vmatprep.subr.mxu0 0.0
    %824 = vmatpush1.msra.mxu0 0.0
    %825 = vmatprep.subr.mxu0 0.0
    %826 = vmatpush1.msra.mxu0 0.0
    %827 = vmatprep.subr.mxu0 0.0
    %828 = vmatpush1.msra.mxu0 0.0
    %829 = vmatprep.subr.mxu0 0.0
    %830 = vmatpush1.msra.mxu0 0.0
    %831 = vmatprep.subr.mxu0 0.0
    %832 = vmatpush1.msra.mxu0 0.0
    %833 = vmatprep.subr.mxu0 0.0
    %834 = vmatpush1.msra.mxu0 0.0
    %835 = vmatprep.subr.mxu0 0.0
    %836 = vmatpush1.msra.mxu0 0.0
    %837 = vmatprep.subr.mxu0 0.0
    %838 = vmatpush1.msra.mxu0 0.0
    %839 = vmatprep.subr.mxu0 0.0
    %840 = vmatpush1.msra.mxu0 0.0
    %841 = vmatprep.subr.mxu0 0.0
    %842 = vmatpush1.msra.mxu0 0.0
    %843 = vmatprep.subr.mxu0 0.0
    %844 = vmatpush1.msra.mxu0 0.0
    %845 = vmatprep.subr.mxu0 0.0
    %846 = vmatpush1.msra.mxu0 0.0
    %847 = vmatprep.subr.mxu0 0.0
    %848 = vmatpush1.msra.mxu0 0.0
    %849 = vmatprep.subr.mxu0 0.0
    %850 = vmatpush1.msra.mxu0 0.0
    %851 = vmatprep.subr.mxu0 0.0
    %852 = vmatpush1.msra.mxu0 0.0
    %853 = vmatprep.subr.mxu0 0.0
    %854 = vmatpush1.msra.mxu0 0.0
    %855 = vmatprep.subr.mxu0 0.0
    %856 = vmatpush1.msra.mxu0 0.0
    %857 = vmatprep.mubr.f32.mxu0 0.0
    %858 = vmatmul.mubr.f32.gmra.mrb[0].mxu0 %v791
    %v859 = vpop.f32.mrb[0].mxu0
    %v860 = vadd.f32 %v131, %v859
    %v861 = vpop.f32.mrb[0].mxu0
    %862 = vdwg.mxu0
    %s863 = scalar_lea.vmem %s11, 4
    %864 = vst.msk [vmem:[%s863] sm:$0x3] %vm297, %v860
    %v865 = vld [vmem:[%s9 + $0x40] sm:$0xff]
    %v866 = vld [vmem:[%s9 + $0x48] sm:$0xff]
    %v867 = vld [vmem:[%s9 + $0x50] sm:$0xff]
    %v868 = vld [vmem:[%s9 + $0x58] sm:$0xff]
    %870 = vrot.lane.b32.xlu0 %v786, 32
    %v871 = vpop.permute.xlu0 %870
    %v872 = vsel %vm153, %v871, 0
    %874 = vmatprep.subr.mxu0 0.0
    %875 = vmatpush1.msra.mxu0 %v865
    %876 = vmatprep.subr.mxu0 0.0
    %877 = vmatpush1.msra.mxu0 %v866
    %878 = vmatprep.subr.mxu0 0.0
    %879 = vmatpush1.msra.mxu0 %v867
    %880 = vmatprep.subr.mxu0 0.0
    %881 = vmatpush1.msra.mxu0 %v868
    %882 = vmatprep.subr.mxu0 0.0
    %883 = vmatpush1.msra.mxu0 0.0
    %884 = vmatprep.subr.mxu0 0.0
    %885 = vmatpush1.msra.mxu0 0.0
    %886 = vmatprep.subr.mxu0 0.0
    %887 = vmatpush1.msra.mxu0 0.0
    %888 = vmatprep.subr.mxu0 0.0
    %889 = vmatpush1.msra.mxu0 0.0
    %890 = vmatprep.subr.mxu0 0.0
    %891 = vmatpush1.msra.mxu0 0.0
    %892 = vmatprep.subr.mxu0 0.0
    %893 = vmatpush1.msra.mxu0 0.0
    %894 = vmatprep.subr.mxu0 0.0
    %895 = vmatpush1.msra.mxu0 0.0
    %896 = vmatprep.subr.mxu0 0.0
    %897 = vmatpush1.msra.mxu0 0.0
    %898 = vmatprep.subr.mxu0 0.0
    %899 = vmatpush1.msra.mxu0 0.0
    %900 = vmatprep.subr.mxu0 0.0
    %901 = vmatpush1.msra.mxu0 0.0
    %902 = vmatprep.subr.mxu0 0.0
    %903 = vmatpush1.msra.mxu0 0.0
    %904 = vmatprep.subr.mxu0 0.0
    %905 = vmatpush1.msra.mxu0 0.0
    %906 = vmatprep.subr.mxu0 0.0
    %907 = vmatpush1.msra.mxu0 0.0
    %908 = vmatprep.subr.mxu0 0.0
    %909 = vmatpush1.msra.mxu0 0.0
    %910 = vmatprep.subr.mxu0 0.0
    %911 = vmatpush1.msra.mxu0 0.0
    %912 = vmatprep.subr.mxu0 0.0
    %913 = vmatpush1.msra.mxu0 0.0
    %914 = vmatprep.subr.mxu0 0.0
    %915 = vmatpush1.msra.mxu0 0.0
    %916 = vmatprep.subr.mxu0 0.0
    %917 = vmatpush1.msra.mxu0 0.0
    %918 = vmatprep.subr.mxu0 0.0
    %919 = vmatpush1.msra.mxu0 0.0
    %920 = vmatprep.subr.mxu0 0.0
    %921 = vmatpush1.msra.mxu0 0.0
    %922 = vmatprep.subr.mxu0 0.0
    %923 = vmatpush1.msra.mxu0 0.0
    %924 = vmatprep.subr.mxu0 0.0
    %925 = vmatpush1.msra.mxu0 0.0
    %926 = vmatprep.subr.mxu0 0.0
    %927 = vmatpush1.msra.mxu0 0.0
    %928 = vmatprep.subr.mxu0 0.0
    %929 = vmatpush1.msra.mxu0 0.0
    %930 = vmatprep.subr.mxu0 0.0
    %931 = vmatpush1.msra.mxu0 0.0
    %932 = vmatprep.subr.mxu0 0.0
    %933 = vmatpush1.msra.mxu0 0.0
    %934 = vmatprep.subr.mxu0 0.0
    %935 = vmatpush1.msra.mxu0 0.0
    %936 = vmatprep.subr.mxu0 0.0
    %937 = vmatpush1.msra.mxu0 0.0
    %938 = vmatprep.mubr.f32.mxu0 0.0
    %939 = vmatmul.mubr.f32.gmra.mrb[0].mxu0 %v872
    %v940 = vpop.f32.mrb[0].mxu0
    %v941 = vadd.f32 0.0, %v940
    %v942 = vpop.f32.mrb[0].mxu0
    %943 = vdwg.mxu0
    %v944 = vadd.f32 %v667, %v941
    %v945 = vpack.c.bf16 %v787, %v787
    %v946 = vpack.c.bf16 %v786, %v786
    %948 = vrot.lane.b32.xlu0 %v946, 32
    %v949 = vpop.permute.xlu0 %948
    %v951 = vsel %vm153, %v949, 0
    %953 = vmatprep.subr.bf16.mxu0 0
    %954 = vmatpush1.bf16.msra.mxu0 %v149
    %955 = vmatprep.subr.bf16.mxu0 0
    %956 = vmatpush1.bf16.msra.mxu0 %v150
    %957 = vmatprep.subr.bf16.mxu0 0
    %958 = vmatpush1.bf16.msra.mxu0 0
    %959 = vmatprep.subr.bf16.mxu0 0
    %960 = vmatpush1.bf16.msra.mxu0 0
    %961 = vmatprep.subr.bf16.mxu0 0
    %962 = vmatpush1.bf16.msra.mxu0 0
    %963 = vmatprep.subr.bf16.mxu0 0
    %964 = vmatpush1.bf16.msra.mxu0 0
    %965 = vmatprep.subr.bf16.mxu0 0
    %966 = vmatpush1.bf16.msra.mxu0 0
    %967 = vmatprep.subr.bf16.mxu0 0
    %968 = vmatpush1.bf16.msra.mxu0 0
    %969 = vmatprep.subr.bf16.mxu0 0
    %970 = vmatpush1.bf16.msra.mxu0 0
    %971 = vmatprep.subr.bf16.mxu0 0
    %972 = vmatpush1.bf16.msra.mxu0 0
    %973 = vmatprep.subr.bf16.mxu0 0
    %974 = vmatpush1.bf16.msra.mxu0 0
    %975 = vmatprep.subr.bf16.mxu0 0
    %976 = vmatpush1.bf16.msra.mxu0 0
    %977 = vmatprep.subr.bf16.mxu0 0
    %978 = vmatpush1.bf16.msra.mxu0 0
    %979 = vmatprep.subr.bf16.mxu0 0
    %980 = vmatpush1.bf16.msra.mxu0 0
    %981 = vmatprep.subr.bf16.mxu0 0
    %982 = vmatpush1.bf16.msra.mxu0 0
    %983 = vmatprep.subr.bf16.mxu0 0
    %984 = vmatpush1.bf16.msra.mxu0 0
    %985 = vmatprep.mubr.bf16.mxu0 0
    %986 = vmatmul.mubr.bf16.gmra.mrb[0].mxu0 %v951
    %v987 = vpop.f32.mrb[0].mxu0
    %v988 = vadd.f32 0.0, %v987
    %v989 = vpop.f32.mrb[0].mxu0
    %v990 = vpop.f32.mrb[0].mxu0
    %v991 = vpop.f32.mrb[0].mxu0
    %992 = vdwg.mxu0
    %994 = vrot.lane.b32.xlu0 %v945, 32
    %v995 = vpop.permute.xlu0 %994
    %v997 = vsel %vm153, %v995, 0
    %999 = vmatprep.subr.bf16.mxu0 0
    %1000 = vmatpush1.bf16.msra.mxu0 %v438
    %1001 = vmatprep.subr.bf16.mxu0 0
    %1002 = vmatpush1.bf16.msra.mxu0 %v439
    %1003 = vmatprep.subr.bf16.mxu0 0
    %1004 = vmatpush1.bf16.msra.mxu0 0
    %1005 = vmatprep.subr.bf16.mxu0 0
    %1006 = vmatpush1.bf16.msra.mxu0 0
    %1007 = vmatprep.subr.bf16.mxu0 0
    %1008 = vmatpush1.bf16.msra.mxu0 0
    %1009 = vmatprep.subr.bf16.mxu0 0
    %1010 = vmatpush1.bf16.msra.mxu0 0
    %1011 = vmatprep.subr.bf16.mxu0 0
    %1012 = vmatpush1.bf16.msra.mxu0 0
    %1013 = vmatprep.subr.bf16.mxu0 0
    %1014 = vmatpush1.bf16.msra.mxu0 0
    %1015 = vmatprep.subr.bf16.mxu0 0
    %1016 = vmatpush1.bf16.msra.mxu0 0
    %1017 = vmatprep.subr.bf16.mxu0 0
    %1018 = vmatpush1.bf16.msra.mxu0 0
    %1019 = vmatprep.subr.bf16.mxu0 0
    %1020 = vmatpush1.bf16.msra.mxu0 0
    %1021 = vmatprep.subr.bf16.mxu0 0
    %1022 = vmatpush1.bf16.msra.mxu0 0
    %1023 = vmatprep.subr.bf16.mxu0 0
    %1024 = vmatpush1.bf16.msra.mxu0 0
    %1025 = vmatprep.subr.bf16.mxu0 0
    %1026 = vmatpush1.bf16.msra.mxu0 0
    %1027 = vmatprep.subr.bf16.mxu0 0
    %1028 = vmatpush1.bf16.msra.mxu0 0
    %1029 = vmatprep.subr.bf16.mxu0 0
    %1030 = vmatpush1.bf16.msra.mxu0 0
    %1031 = vmatprep.mubr.bf16.mxu0 0
    %1032 = vmatmul.mubr.bf16.gmra.mrb[0].mxu0 %v997
    %v1033 = vpop.f32.mrb[0].mxu0
    %v1034 = vadd.f32 %v988, %v1033
    %v1035 = vpop.f32.mrb[0].mxu0
    %v1036 = vpop.f32.mrb[0].mxu0
    %v1037 = vpop.f32.mrb[0].mxu0
    %1038 = vdwg.mxu0
    %v1039 = vadd.f32 %v1034, %v124
    %v1040 = vxor.u32 %v1039, 2147483648
    %v1041 = vmul.f32 %v1040, 1.442695
    %v1042 = vpow.pop %v1041
    %v1043 = vadd.f32 %v1042, 1.0
    %v1044 = vrcp.pop %v1043
    %v1045 = vmul.f32 1.0, %v1044
    %v1046 = vtanh.pop %v1039
    %v1047 = vmul.f32 %v1045, %v780
    %1049 = vrot.lane.b32.xlu0 %v1046, 64
    %v1050 = vpop.permute.xlu0 %1049
    %v1052 = vmul.f32 %v1045, %v1050
    %1054 = vrot.lane.b32.xlu0 %v1052, 32
    %v1055 = vpop.permute.xlu0 %1054
    %v1057 = vadd.f32 %v1047, %v1055
    %v1058 = vtanh.pop %v1057
    %1060 = vrot.lane.b32.xlu0 %v1058, 64
    %v1061 = vpop.permute.xlu0 %1060
    %v1063 = vmul.f32 %v1045, %v1061
    %v1064 = vtanh.pop %v1063
    %1066 = vrot.lane.b32.xlu0 %v1064, 32
    %v1067 = vpop.permute.xlu0 %1066
    %v1068 = vsel %vm153, %v1067, 0
    %1070 = vmatprep.subr.mxu0 0.0
    %1071 = vmatpush1.msra.mxu0 %v108
    %1072 = vmatprep.subr.mxu0 0.0
    %1073 = vmatpush1.msra.mxu0 %v109
    %1074 = vmatprep.subr.mxu0 0.0
    %1075 = vmatpush1.msra.mxu0 %v110
    %1076 = vmatprep.subr.mxu0 0.0
    %1077 = vmatpush1.msra.mxu0 %v111
    %1078 = vmatprep.subr.mxu0 0.0
    %1079 = vmatpush1.msra.mxu0 0.0
    %1080 = vmatprep.subr.mxu0 0.0
    %1081 = vmatpush1.msra.mxu0 0.0
    %1082 = vmatprep.subr.mxu0 0.0
    %1083 = vmatpush1.msra.mxu0 0.0
    %1084 = vmatprep.subr.mxu0 0.0
    %1085 = vmatpush1.msra.mxu0 0.0
    %1086 = vmatprep.subr.mxu0 0.0
    %1087 = vmatpush1.msra.mxu0 0.0
    %1088 = vmatprep.subr.mxu0 0.0
    %1089 = vmatpush1.msra.mxu0 0.0
    %1090 = vmatprep.subr.mxu0 0.0
    %1091 = vmatpush1.msra.mxu0 0.0
    %1092 = vmatprep.subr.mxu0 0.0
    %1093 = vmatpush1.msra.mxu0 0.0
    %1094 = vmatprep.subr.mxu0 0.0
    %1095 = vmatpush1.msra.mxu0 0.0
    %1096 = vmatprep.subr.mxu0 0.0
    %1097 = vmatpush1.msra.mxu0 0.0
    %1098 = vmatprep.subr.mxu0 0.0
    %1099 = vmatpush1.msra.mxu0 0.0
    %1100 = vmatprep.subr.mxu0 0.0
    %1101 = vmatpush1.msra.mxu0 0.0
    %1102 = vmatprep.subr.mxu0 0.0
    %1103 = vmatpush1.msra.mxu0 0.0
    %1104 = vmatprep.subr.mxu0 0.0
    %1105 = vmatpush1.msra.mxu0 0.0
    %1106 = vmatprep.subr.mxu0 0.0
    %1107 = vmatpush1.msra.mxu0 0.0
    %1108 = vmatprep.subr.mxu0 0.0
    %1109 = vmatpush1.msra.mxu0 0.0
    %1110 = vmatprep.subr.mxu0 0.0
    %1111 = vmatpush1.msra.mxu0 0.0
    %1112 = vmatprep.subr.mxu0 0.0
    %1113 = vmatpush1.msra.mxu0 0.0
    %1114 = vmatprep.subr.mxu0 0.0
    %1115 = vmatpush1.msra.mxu0 0.0
    %1116 = vmatprep.subr.mxu0 0.0
    %1117 = vmatpush1.msra.mxu0 0.0
    %1118 = vmatprep.subr.mxu0 0.0
    %1119 = vmatpush1.msra.mxu0 0.0
    %1120 = vmatprep.subr.mxu0 0.0
    %1121 = vmatpush1.msra.mxu0 0.0
    %1122 = vmatprep.subr.mxu0 0.0
    %1123 = vmatpush1.msra.mxu0 0.0
    %1124 = vmatprep.subr.mxu0 0.0
    %1125 = vmatpush1.msra.mxu0 0.0
    %1126 = vmatprep.subr.mxu0 0.0
    %1127 = vmatpush1.msra.mxu0 0.0
    %1128 = vmatprep.subr.mxu0 0.0
    %1129 = vmatpush1.msra.mxu0 0.0
    %1130 = vmatprep.subr.mxu0 0.0
    %1131 = vmatpush1.msra.mxu0 0.0
    %1132 = vmatprep.subr.mxu0 0.0
    %1133 = vmatpush1.msra.mxu0 0.0
    %1134 = vmatprep.mubr.f32.mxu0 0.0
    %1135 = vmatmul.mubr.f32.gmra.mrb[0].mxu0 %v1068
    %v1136 = vpop.f32.mrb[0].mxu0
    %v1137 = vadd.f32 %v131, %v1136
    %v1138 = vpop.f32.mrb[0].mxu0
    %1139 = vdwg.mxu0
    %s1140 = scalar_lea.vmem %s11, 6
    %1141 = vst.msk [vmem:[%s1140] sm:$0x3] %vm297, %v1137
    %v1142 = vld [vmem:[%s9 + $0x60] sm:$0xff]
    %v1143 = vld [vmem:[%s9 + $0x68] sm:$0xff]
    %v1144 = vld [vmem:[%s9 + $0x70] sm:$0xff]
    %v1145 = vld [vmem:[%s9 + $0x78] sm:$0xff]
    %1147 = vrot.lane.b32.xlu0 %v1063, 32
    %v1148 = vpop.permute.xlu0 %1147
    %v1149 = vsel %vm153, %v1148, 0
    %1151 = vmatprep.subr.mxu0 0.0
    %1152 = vmatpush1.msra.mxu0 %v1142
    %1153 = vmatprep.subr.mxu0 0.0
    %1154 = vmatpush1.msra.mxu0 %v1143
    %1155 = vmatprep.subr.mxu0 0.0
    %1156 = vmatpush1.msra.mxu0 %v1144
    %1157 = vmatprep.subr.mxu0 0.0
    %1158 = vmatpush1.msra.mxu0 %v1145
    %1159 = vmatprep.subr.mxu0 0.0
    %1160 = vmatpush1.msra.mxu0 0.0
    %1161 = vmatprep.subr.mxu0 0.0
    %1162 = vmatpush1.msra.mxu0 0.0
    %1163 = vmatprep.subr.mxu0 0.0
    %1164 = vmatpush1.msra.mxu0 0.0
    %1165 = vmatprep.subr.mxu0 0.0
    %1166 = vmatpush1.msra.mxu0 0.0
    %1167 = vmatprep.subr.mxu0 0.0
    %1168 = vmatpush1.msra.mxu0 0.0
    %1169 = vmatprep.subr.mxu0 0.0
    %1170 = vmatpush1.msra.mxu0 0.0
    %1171 = vmatprep.subr.mxu0 0.0
    %1172 = vmatpush1.msra.mxu0 0.0
    %1173 = vmatprep.subr.mxu0 0.0
    %1174 = vmatpush1.msra.mxu0 0.0
    %1175 = vmatprep.subr.mxu0 0.0
    %1176 = vmatpush1.msra.mxu0 0.0
    %1177 = vmatprep.subr.mxu0 0.0
    %1178 = vmatpush1.msra.mxu0 0.0
    %1179 = vmatprep.subr.mxu0 0.0
    %1180 = vmatpush1.msra.mxu0 0.0
    %1181 = vmatprep.subr.mxu0 0.0
    %1182 = vmatpush1.msra.mxu0 0.0
    %1183 = vmatprep.subr.mxu0 0.0
    %1184 = vmatpush1.msra.mxu0 0.0
    %1185 = vmatprep.subr.mxu0 0.0
    %1186 = vmatpush1.msra.mxu0 0.0
    %1187 = vmatprep.subr.mxu0 0.0
    %1188 = vmatpush1.msra.mxu0 0.0
    %1189 = vmatprep.subr.mxu0 0.0
    %1190 = vmatpush1.msra.mxu0 0.0
    %1191 = vmatprep.subr.mxu0 0.0
    %1192 = vmatpush1.msra.mxu0 0.0
    %1193 = vmatprep.subr.mxu0 0.0
    %1194 = vmatpush1.msra.mxu0 0.0
    %1195 = vmatprep.subr.mxu0 0.0
    %1196 = vmatpush1.msra.mxu0 0.0
    %1197 = vmatprep.subr.mxu0 0.0
    %1198 = vmatpush1.msra.mxu0 0.0
    %1199 = vmatprep.subr.mxu0 0.0
    %1200 = vmatpush1.msra.mxu0 0.0
    %1201 = vmatprep.subr.mxu0 0.0
    %1202 = vmatpush1.msra.mxu0 0.0
    %1203 = vmatprep.subr.mxu0 0.0
    %1204 = vmatpush1.msra.mxu0 0.0
    %1205 = vmatprep.subr.mxu0 0.0
    %1206 = vmatpush1.msra.mxu0 0.0
    %1207 = vmatprep.subr.mxu0 0.0
    %1208 = vmatpush1.msra.mxu0 0.0
    %1209 = vmatprep.subr.mxu0 0.0
    %1210 = vmatpush1.msra.mxu0 0.0
    %1211 = vmatprep.subr.mxu0 0.0
    %1212 = vmatpush1.msra.mxu0 0.0
    %1213 = vmatprep.subr.mxu0 0.0
    %1214 = vmatpush1.msra.mxu0 0.0
    %1215 = vmatprep.mubr.f32.mxu0 0.0
    %1216 = vmatmul.mubr.f32.gmra.mrb[0].mxu0 %v1149
    %v1217 = vpop.f32.mrb[0].mxu0
    %v1218 = vadd.f32 0.0, %v1217
    %v1219 = vpop.f32.mrb[0].mxu0
    %1220 = vdwg.mxu0
    %v1221 = vadd.f32 %v944, %v1218
    %v1222 = vpack.c.bf16 %v1064, %v1064
    %v1223 = vpack.c.bf16 %v1063, %v1063
    %1225 = vrot.lane.b32.xlu0 %v1223, 32
    %v1226 = vpop.permute.xlu0 %1225
    %v1228 = vsel %vm153, %v1226, 0
    %1230 = vmatprep.subr.bf16.mxu0 0
    %1231 = vmatpush1.bf16.msra.mxu0 %v149
    %1232 = vmatprep.subr.bf16.mxu0 0
    %1233 = vmatpush1.bf16.msra.mxu0 %v150
    %1234 = vmatprep.subr.bf16.mxu0 0
    %1235 = vmatpush1.bf16.msra.mxu0 0
    %1236 = vmatprep.subr.bf16.mxu0 0
    %1237 = vmatpush1.bf16.msra.mxu0 0
    %1238 = vmatprep.subr.bf16.mxu0 0
    %1239 = vmatpush1.bf16.msra.mxu0 0
    %1240 = vmatprep.subr.bf16.mxu0 0
    %1241 = vmatpush1.bf16.msra.mxu0 0
    %1242 = vmatprep.subr.bf16.mxu0 0
    %1243 = vmatpush1.bf16.msra.mxu0 0
    %1244 = vmatprep.subr.bf16.mxu0 0
    %1245 = vmatpush1.bf16.msra.mxu0 0
    %1246 = vmatprep.subr.bf16.mxu0 0
    %1247 = vmatpush1.bf16.msra.mxu0 0
    %1248 = vmatprep.subr.bf16.mxu0 0
    %1249 = vmatpush1.bf16.msra.mxu0 0
    %1250 = vmatprep.subr.bf16.mxu0 0
    %1251 = vmatpush1.bf16.msra.mxu0 0
    %1252 = vmatprep.subr.bf16.mxu0 0
    %1253 = vmatpush1.bf16.msra.mxu0 0
    %1254 = vmatprep.subr.bf16.mxu0 0
    %1255 = vmatpush1.bf16.msra.mxu0 0
    %1256 = vmatprep.subr.bf16.mxu0 0
    %1257 = vmatpush1.bf16.msra.mxu0 0
    %1258 = vmatprep.subr.bf16.mxu0 0
    %1259 = vmatpush1.bf16.msra.mxu0 0
    %1260 = vmatprep.subr.bf16.mxu0 0
    %1261 = vmatpush1.bf16.msra.mxu0 0
    %1262 = vmatprep.mubr.bf16.mxu0 0
    %1263 = vmatmul.mubr.bf16.gmra.mrb[0].mxu0 %v1228
    %v1264 = vpop.f32.mrb[0].mxu0
    %v1265 = vadd.f32 0.0, %v1264
    %v1266 = vpop.f32.mrb[0].mxu0
    %v1267 = vpop.f32.mrb[0].mxu0
    %v1268 = vpop.f32.mrb[0].mxu0
    %1269 = vdwg.mxu0
    %1271 = vrot.lane.b32.xlu0 %v1222, 32
    %v1272 = vpop.permute.xlu0 %1271
    %v1274 = vsel %vm153, %v1272, 0
    %1276 = vmatprep.subr.bf16.mxu0 0
    %1277 = vmatpush1.bf16.msra.mxu0 %v438
    %1278 = vmatprep.subr.bf16.mxu0 0
    %1279 = vmatpush1.bf16.msra.mxu0 %v439
    %1280 = vmatprep.subr.bf16.mxu0 0
    %1281 = vmatpush1.bf16.msra.mxu0 0
    %1282 = vmatprep.subr.bf16.mxu0 0
    %1283 = vmatpush1.bf16.msra.mxu0 0
    %1284 = vmatprep.subr.bf16.mxu0 0
    %1285 = vmatpush1.bf16.msra.mxu0 0
    %1286 = vmatprep.subr.bf16.mxu0 0
    %1287 = vmatpush1.bf16.msra.mxu0 0
    %1288 = vmatprep.subr.bf16.mxu0 0
    %1289 = vmatpush1.bf16.msra.mxu0 0
    %1290 = vmatprep.subr.bf16.mxu0 0
    %1291 = vmatpush1.bf16.msra.mxu0 0
    %1292 = vmatprep.subr.bf16.mxu0 0
    %1293 = vmatpush1.bf16.msra.mxu0 0
    %1294 = vmatprep.subr.bf16.mxu0 0
    %1295 = vmatpush1.bf16.msra.mxu0 0
    %1296 = vmatprep.subr.bf16.mxu0 0
    %1297 = vmatpush1.bf16.msra.mxu0 0
    %1298 = vmatprep.subr.bf16.mxu0 0
    %1299 = vmatpush1.bf16.msra.mxu0 0
    %1300 = vmatprep.subr.bf16.mxu0 0
    %1301 = vmatpush1.bf16.msra.mxu0 0
    %1302 = vmatprep.subr.bf16.mxu0 0
    %1303 = vmatpush1.bf16.msra.mxu0 0
    %1304 = vmatprep.subr.bf16.mxu0 0
    %1305 = vmatpush1.bf16.msra.mxu0 0
    %1306 = vmatprep.subr.bf16.mxu0 0
    %1307 = vmatpush1.bf16.msra.mxu0 0
    %1308 = vmatprep.mubr.bf16.mxu0 0
    %1309 = vmatmul.mubr.bf16.gmra.mrb[0].mxu0 %v1274
    %v1310 = vpop.f32.mrb[0].mxu0
    %v1311 = vadd.f32 %v1265, %v1310
    %v1312 = vpop.f32.mrb[0].mxu0
    %v1313 = vpop.f32.mrb[0].mxu0
    %v1314 = vpop.f32.mrb[0].mxu0
    %1315 = vdwg.mxu0
    %v1316 = vadd.f32 %v1311, %v124
    %v1317 = vxor.u32 %v1316, 2147483648
    %v1318 = vmul.f32 %v1317, 1.442695
    %v1319 = vpow.pop %v1318
    %v1320 = vadd.f32 %v1319, 1.0
    %v1321 = vrcp.pop %v1320
    %v1322 = vmul.f32 1.0, %v1321
    %v1323 = vtanh.pop %v1316
    %v1324 = vmul.f32 %v1322, %v1057
    %1326 = vrot.lane.b32.xlu0 %v1323, 64
    %v1327 = vpop.permute.xlu0 %1326
    %v1329 = vmul.f32 %v1322, %v1327
    %1331 = vrot.lane.b32.xlu0 %v1329, 32
    %v1332 = vpop.permute.xlu0 %1331
    %v1334 = vadd.f32 %v1324, %v1332
    %v1335 = vtanh.pop %v1334
    %1337 = vrot.lane.b32.xlu0 %v1335, 64
    %v1338 = vpop.permute.xlu0 %1337
    %v1340 = vmul.f32 %v1322, %v1338
    %v1341 = vtanh.pop %v1340
    %1343 = vrot.lane.b32.xlu0 %v1341, 32
    %v1344 = vpop.permute.xlu0 %1343
    %v1345 = vsel %vm153, %v1344, 0
    %1347 = vmatprep.subr.mxu0 0.0
    %1348 = vmatpush1.msra.mxu0 %v108
    %1349 = vmatprep.subr.mxu0 0.0
    %1350 = vmatpush1.msra.mxu0 %v109
    %1351 = vmatprep.subr.mxu0 0.0
    %1352 = vmatpush1.msra.mxu0 %v110
    %1353 = vmatprep.subr.mxu0 0.0
    %1354 = vmatpush1.msra.mxu0 %v111
    %1355 = vmatprep.subr.mxu0 0.0
    %1356 = vmatpush1.msra.mxu0 0.0
    %1357 = vmatprep.subr.mxu0 0.0
    %1358 = vmatpush1.msra.mxu0 0.0
    %1359 = vmatprep.subr.mxu0 0.0
    %1360 = vmatpush1.msra.mxu0 0.0
    %1361 = vmatprep.subr.mxu0 0.0
    %1362 = vmatpush1.msra.mxu0 0.0
    %1363 = vmatprep.subr.mxu0 0.0
    %1364 = vmatpush1.msra.mxu0 0.0
    %1365 = vmatprep.subr.mxu0 0.0
    %1366 = vmatpush1.msra.mxu0 0.0
    %1367 = vmatprep.subr.mxu0 0.0
    %1368 = vmatpush1.msra.mxu0 0.0
    %1369 = vmatprep.subr.mxu0 0.0
    %1370 = vmatpush1.msra.mxu0 0.0
    %1371 = vmatprep.subr.mxu0 0.0
    %1372 = vmatpush1.msra.mxu0 0.0
    %1373 = vmatprep.subr.mxu0 0.0
    %1374 = vmatpush1.msra.mxu0 0.0
    %1375 = vmatprep.subr.mxu0 0.0
    %1376 = vmatpush1.msra.mxu0 0.0
    %1377 = vmatprep.subr.mxu0 0.0
    %1378 = vmatpush1.msra.mxu0 0.0
    %1379 = vmatprep.subr.mxu0 0.0
    %1380 = vmatpush1.msra.mxu0 0.0
    %1381 = vmatprep.subr.mxu0 0.0
    %1382 = vmatpush1.msra.mxu0 0.0
    %1383 = vmatprep.subr.mxu0 0.0
    %1384 = vmatpush1.msra.mxu0 0.0
    %1385 = vmatprep.subr.mxu0 0.0
    %1386 = vmatpush1.msra.mxu0 0.0
    %1387 = vmatprep.subr.mxu0 0.0
    %1388 = vmatpush1.msra.mxu0 0.0
    %1389 = vmatprep.subr.mxu0 0.0
    %1390 = vmatpush1.msra.mxu0 0.0
    %1391 = vmatprep.subr.mxu0 0.0
    %1392 = vmatpush1.msra.mxu0 0.0
    %1393 = vmatprep.subr.mxu0 0.0
    %1394 = vmatpush1.msra.mxu0 0.0
    %1395 = vmatprep.subr.mxu0 0.0
    %1396 = vmatpush1.msra.mxu0 0.0
    %1397 = vmatprep.subr.mxu0 0.0
    %1398 = vmatpush1.msra.mxu0 0.0
    %1399 = vmatprep.subr.mxu0 0.0
    %1400 = vmatpush1.msra.mxu0 0.0
    %1401 = vmatprep.subr.mxu0 0.0
    %1402 = vmatpush1.msra.mxu0 0.0
    %1403 = vmatprep.subr.mxu0 0.0
    %1404 = vmatpush1.msra.mxu0 0.0
    %1405 = vmatprep.subr.mxu0 0.0
    %1406 = vmatpush1.msra.mxu0 0.0
    %1407 = vmatprep.subr.mxu0 0.0
    %1408 = vmatpush1.msra.mxu0 0.0
    %1409 = vmatprep.subr.mxu0 0.0
    %1410 = vmatpush1.msra.mxu0 0.0
    %1411 = vmatprep.mubr.f32.mxu0 0.0
    %1412 = vmatmul.mubr.f32.gmra.mrb[0].mxu0 %v1345
    %v1413 = vpop.f32.mrb[0].mxu0
    %v1414 = vadd.f32 %v131, %v1413
    %v1415 = vpop.f32.mrb[0].mxu0
    %1416 = vdwg.mxu0
    %s1417 = scalar_lea.vmem %s11, 8
    %1418 = vst.msk [vmem:[%s1417] sm:$0x3] %vm297, %v1414
    %v1419 = vld [vmem:[%s9 + $0x80] sm:$0xff]
    %v1420 = vld [vmem:[%s9 + $0x88] sm:$0xff]
    %v1421 = vld [vmem:[%s9 + $0x90] sm:$0xff]
    %v1422 = vld [vmem:[%s9 + $0x98] sm:$0xff]
    %1424 = vrot.lane.b32.xlu0 %v1340, 32
    %v1425 = vpop.permute.xlu0 %1424
    %v1426 = vsel %vm153, %v1425, 0
    %1428 = vmatprep.subr.mxu0 0.0
    %1429 = vmatpush1.msra.mxu0 %v1419
    %1430 = vmatprep.subr.mxu0 0.0
    %1431 = vmatpush1.msra.mxu0 %v1420
    %1432 = vmatprep.subr.mxu0 0.0
    %1433 = vmatpush1.msra.mxu0 %v1421
    %1434 = vmatprep.subr.mxu0 0.0
    %1435 = vmatpush1.msra.mxu0 %v1422
    %1436 = vmatprep.subr.mxu0 0.0
    %1437 = vmatpush1.msra.mxu0 0.0
    %1438 = vmatprep.subr.mxu0 0.0
    %1439 = vmatpush1.msra.mxu0 0.0
    %1440 = vmatprep.subr.mxu0 0.0
    %1441 = vmatpush1.msra.mxu0 0.0
    %1442 = vmatprep.subr.mxu0 0.0
    %1443 = vmatpush1.msra.mxu0 0.0
    %1444 = vmatprep.subr.mxu0 0.0
    %1445 = vmatpush1.msra.mxu0 0.0
    %1446 = vmatprep.subr.mxu0 0.0
    %1447 = vmatpush1.msra.mxu0 0.0
    %1448 = vmatprep.subr.mxu0 0.0
    %1449 = vmatpush1.msra.mxu0 0.0
    %1450 = vmatprep.subr.mxu0 0.0
    %1451 = vmatpush1.msra.mxu0 0.0
    %1452 = vmatprep.subr.mxu0 0.0
    %1453 = vmatpush1.msra.mxu0 0.0
    %1454 = vmatprep.subr.mxu0 0.0
    %1455 = vmatpush1.msra.mxu0 0.0
    %1456 = vmatprep.subr.mxu0 0.0
    %1457 = vmatpush1.msra.mxu0 0.0
    %1458 = vmatprep.subr.mxu0 0.0
    %1459 = vmatpush1.msra.mxu0 0.0
    %1460 = vmatprep.subr.mxu0 0.0
    %1461 = vmatpush1.msra.mxu0 0.0
    %1462 = vmatprep.subr.mxu0 0.0
    %1463 = vmatpush1.msra.mxu0 0.0
    %1464 = vmatprep.subr.mxu0 0.0
    %1465 = vmatpush1.msra.mxu0 0.0
    %1466 = vmatprep.subr.mxu0 0.0
    %1467 = vmatpush1.msra.mxu0 0.0
    %1468 = vmatprep.subr.mxu0 0.0
    %1469 = vmatpush1.msra.mxu0 0.0
    %1470 = vmatprep.subr.mxu0 0.0
    %1471 = vmatpush1.msra.mxu0 0.0
    %1472 = vmatprep.subr.mxu0 0.0
    %1473 = vmatpush1.msra.mxu0 0.0
    %1474 = vmatprep.subr.mxu0 0.0
    %1475 = vmatpush1.msra.mxu0 0.0
    %1476 = vmatprep.subr.mxu0 0.0
    %1477 = vmatpush1.msra.mxu0 0.0
    %1478 = vmatprep.subr.mxu0 0.0
    %1479 = vmatpush1.msra.mxu0 0.0
    %1480 = vmatprep.subr.mxu0 0.0
    %1481 = vmatpush1.msra.mxu0 0.0
    %1482 = vmatprep.subr.mxu0 0.0
    %1483 = vmatpush1.msra.mxu0 0.0
    %1484 = vmatprep.subr.mxu0 0.0
    %1485 = vmatpush1.msra.mxu0 0.0
    %1486 = vmatprep.subr.mxu0 0.0
    %1487 = vmatpush1.msra.mxu0 0.0
    %1488 = vmatprep.subr.mxu0 0.0
    %1489 = vmatpush1.msra.mxu0 0.0
    %1490 = vmatprep.subr.mxu0 0.0
    %1491 = vmatpush1.msra.mxu0 0.0
    %1492 = vmatprep.mubr.f32.mxu0 0.0
    %1493 = vmatmul.mubr.f32.gmra.mrb[0].mxu0 %v1426
    %v1494 = vpop.f32.mrb[0].mxu0
    %v1495 = vadd.f32 0.0, %v1494
    %v1496 = vpop.f32.mrb[0].mxu0
    %1497 = vdwg.mxu0
    %v1498 = vadd.f32 %v1221, %v1495
    %v1499 = vpack.c.bf16 %v1341, %v1341
    %v1500 = vpack.c.bf16 %v1340, %v1340
    %1502 = vrot.lane.b32.xlu0 %v1500, 32
    %v1503 = vpop.permute.xlu0 %1502
    %v1505 = vsel %vm153, %v1503, 0
    %1507 = vmatprep.subr.bf16.mxu0 0
    %1508 = vmatpush1.bf16.msra.mxu0 %v149
    %1509 = vmatprep.subr.bf16.mxu0 0
    %1510 = vmatpush1.bf16.msra.mxu0 %v150
    %1511 = vmatprep.subr.bf16.mxu0 0
    %1512 = vmatpush1.bf16.msra.mxu0 0
    %1513 = vmatprep.subr.bf16.mxu0 0
    %1514 = vmatpush1.bf16.msra.mxu0 0
    %1515 = vmatprep.subr.bf16.mxu0 0
    %1516 = vmatpush1.bf16.msra.mxu0 0
    %1517 = vmatprep.subr.bf16.mxu0 0
    %1518 = vmatpush1.bf16.msra.mxu0 0
    %1519 = vmatprep.subr.bf16.mxu0 0
    %1520 = vmatpush1.bf16.msra.mxu0 0
    %1521 = vmatprep.subr.bf16.mxu0 0
    %1522 = vmatpush1.bf16.msra.mxu0 0
    %1523 = vmatprep.subr.bf16.mxu0 0
    %1524 = vmatpush1.bf16.msra.mxu0 0
    %1525 = vmatprep.subr.bf16.mxu0 0
    %1526 = vmatpush1.bf16.msra.mxu0 0
    %1527 = vmatprep.subr.bf16.mxu0 0
    %1528 = vmatpush1.bf16.msra.mxu0 0
    %1529 = vmatprep.subr.bf16.mxu0 0
    %1530 = vmatpush1.bf16.msra.mxu0 0
    %1531 = vmatprep.subr.bf16.mxu0 0
    %1532 = vmatpush1.bf16.msra.mxu0 0
    %1533 = vmatprep.subr.bf16.mxu0 0
    %1534 = vmatpush1.bf16.msra.mxu0 0
    %1535 = vmatprep.subr.bf16.mxu0 0
    %1536 = vmatpush1.bf16.msra.mxu0 0
    %1537 = vmatprep.subr.bf16.mxu0 0
    %1538 = vmatpush1.bf16.msra.mxu0 0
    %1539 = vmatprep.mubr.bf16.mxu0 0
    %1540 = vmatmul.mubr.bf16.gmra.mrb[0].mxu0 %v1505
    %v1541 = vpop.f32.mrb[0].mxu0
    %v1542 = vadd.f32 0.0, %v1541
    %v1543 = vpop.f32.mrb[0].mxu0
    %v1544 = vpop.f32.mrb[0].mxu0
    %v1545 = vpop.f32.mrb[0].mxu0
    %1546 = vdwg.mxu0
    %1548 = vrot.lane.b32.xlu0 %v1499, 32
    %v1549 = vpop.permute.xlu0 %1548
    %v1551 = vsel %vm153, %v1549, 0
    %1553 = vmatprep.subr.bf16.mxu0 0
    %1554 = vmatpush1.bf16.msra.mxu0 %v438
    %1555 = vmatprep.subr.bf16.mxu0 0
    %1556 = vmatpush1.bf16.msra.mxu0 %v439
    %1557 = vmatprep.subr.bf16.mxu0 0
    %1558 = vmatpush1.bf16.msra.mxu0 0
    %1559 = vmatprep.subr.bf16.mxu0 0
    %1560 = vmatpush1.bf16.msra.mxu0 0
    %1561 = vmatprep.subr.bf16.mxu0 0
    %1562 = vmatpush1.bf16.msra.mxu0 0
    %1563 = vmatprep.subr.bf16.mxu0 0
    %1564 = vmatpush1.bf16.msra.mxu0 0
    %1565 = vmatprep.subr.bf16.mxu0 0
    %1566 = vmatpush1.bf16.msra.mxu0 0
    %1567 = vmatprep.subr.bf16.mxu0 0
    %1568 = vmatpush1.bf16.msra.mxu0 0
    %1569 = vmatprep.subr.bf16.mxu0 0
    %1570 = vmatpush1.bf16.msra.mxu0 0
    %1571 = vmatprep.subr.bf16.mxu0 0
    %1572 = vmatpush1.bf16.msra.mxu0 0
    %1573 = vmatprep.subr.bf16.mxu0 0
    %1574 = vmatpush1.bf16.msra.mxu0 0
    %1575 = vmatprep.subr.bf16.mxu0 0
    %1576 = vmatpush1.bf16.msra.mxu0 0
    %1577 = vmatprep.subr.bf16.mxu0 0
    %1578 = vmatpush1.bf16.msra.mxu0 0
    %1579 = vmatprep.subr.bf16.mxu0 0
    %1580 = vmatpush1.bf16.msra.mxu0 0
    %1581 = vmatprep.subr.bf16.mxu0 0
    %1582 = vmatpush1.bf16.msra.mxu0 0
    %1583 = vmatprep.subr.bf16.mxu0 0
    %1584 = vmatpush1.bf16.msra.mxu0 0
    %1585 = vmatprep.mubr.bf16.mxu0 0
    %1586 = vmatmul.mubr.bf16.gmra.mrb[0].mxu0 %v1551
    %v1587 = vpop.f32.mrb[0].mxu0
    %v1588 = vadd.f32 %v1542, %v1587
    %v1589 = vpop.f32.mrb[0].mxu0
    %v1590 = vpop.f32.mrb[0].mxu0
    %v1591 = vpop.f32.mrb[0].mxu0
    %1592 = vdwg.mxu0
    %v1593 = vadd.f32 %v1588, %v124
    %v1594 = vxor.u32 %v1593, 2147483648
    %v1595 = vmul.f32 %v1594, 1.442695
    %v1596 = vpow.pop %v1595
    %v1597 = vadd.f32 %v1596, 1.0
    %v1598 = vrcp.pop %v1597
    %v1599 = vmul.f32 1.0, %v1598
    %v1600 = vtanh.pop %v1593
    %v1601 = vmul.f32 %v1599, %v1334
    %1603 = vrot.lane.b32.xlu0 %v1600, 64
    %v1604 = vpop.permute.xlu0 %1603
    %v1606 = vmul.f32 %v1599, %v1604
    %1608 = vrot.lane.b32.xlu0 %v1606, 32
    %v1609 = vpop.permute.xlu0 %1608
    %v1611 = vadd.f32 %v1601, %v1609
    %v1612 = vtanh.pop %v1611
    %1614 = vrot.lane.b32.xlu0 %v1612, 64
    %v1615 = vpop.permute.xlu0 %1614
    %v1617 = vmul.f32 %v1599, %v1615
    %v1618 = vtanh.pop %v1617
    %1620 = vrot.lane.b32.xlu0 %v1618, 32
    %v1621 = vpop.permute.xlu0 %1620
    %v1622 = vsel %vm153, %v1621, 0
    %1624 = vmatprep.subr.mxu0 0.0
    %1625 = vmatpush1.msra.mxu0 %v108
    %1626 = vmatprep.subr.mxu0 0.0
    %1627 = vmatpush1.msra.mxu0 %v109
    %1628 = vmatprep.subr.mxu0 0.0
    %1629 = vmatpush1.msra.mxu0 %v110
    %1630 = vmatprep.subr.mxu0 0.0
    %1631 = vmatpush1.msra.mxu0 %v111
    %1632 = vmatprep.subr.mxu0 0.0
    %1633 = vmatpush1.msra.mxu0 0.0
    %1634 = vmatprep.subr.mxu0 0.0
    %1635 = vmatpush1.msra.mxu0 0.0
    %1636 = vmatprep.subr.mxu0 0.0
    %1637 = vmatpush1.msra.mxu0 0.0
    %1638 = vmatprep.subr.mxu0 0.0
    %1639 = vmatpush1.msra.mxu0 0.0
    %1640 = vmatprep.subr.mxu0 0.0
    %1641 = vmatpush1.msra.mxu0 0.0
    %1642 = vmatprep.subr.mxu0 0.0
    %1643 = vmatpush1.msra.mxu0 0.0
    %1644 = vmatprep.subr.mxu0 0.0
    %1645 = vmatpush1.msra.mxu0 0.0
    %1646 = vmatprep.subr.mxu0 0.0
    %1647 = vmatpush1.msra.mxu0 0.0
    %1648 = vmatprep.subr.mxu0 0.0
    %1649 = vmatpush1.msra.mxu0 0.0
    %1650 = vmatprep.subr.mxu0 0.0
    %1651 = vmatpush1.msra.mxu0 0.0
    %1652 = vmatprep.subr.mxu0 0.0
    %1653 = vmatpush1.msra.mxu0 0.0
    %1654 = vmatprep.subr.mxu0 0.0
    %1655 = vmatpush1.msra.mxu0 0.0
    %1656 = vmatprep.subr.mxu0 0.0
    %1657 = vmatpush1.msra.mxu0 0.0
    %1658 = vmatprep.subr.mxu0 0.0
    %1659 = vmatpush1.msra.mxu0 0.0
    %1660 = vmatprep.subr.mxu0 0.0
    %1661 = vmatpush1.msra.mxu0 0.0
    %1662 = vmatprep.subr.mxu0 0.0
    %1663 = vmatpush1.msra.mxu0 0.0
    %1664 = vmatprep.subr.mxu0 0.0
    %1665 = vmatpush1.msra.mxu0 0.0
    %1666 = vmatprep.subr.mxu0 0.0
    %1667 = vmatpush1.msra.mxu0 0.0
    %1668 = vmatprep.subr.mxu0 0.0
    %1669 = vmatpush1.msra.mxu0 0.0
    %1670 = vmatprep.subr.mxu0 0.0
    %1671 = vmatpush1.msra.mxu0 0.0
    %1672 = vmatprep.subr.mxu0 0.0
    %1673 = vmatpush1.msra.mxu0 0.0
    %1674 = vmatprep.subr.mxu0 0.0
    %1675 = vmatpush1.msra.mxu0 0.0
    %1676 = vmatprep.subr.mxu0 0.0
    %1677 = vmatpush1.msra.mxu0 0.0
    %1678 = vmatprep.subr.mxu0 0.0
    %1679 = vmatpush1.msra.mxu0 0.0
    %1680 = vmatprep.subr.mxu0 0.0
    %1681 = vmatpush1.msra.mxu0 0.0
    %1682 = vmatprep.subr.mxu0 0.0
    %1683 = vmatpush1.msra.mxu0 0.0
    %1684 = vmatprep.subr.mxu0 0.0
    %1685 = vmatpush1.msra.mxu0 0.0
    %1686 = vmatprep.subr.mxu0 0.0
    %1687 = vmatpush1.msra.mxu0 0.0
    %1688 = vmatprep.mubr.f32.mxu0 0.0
    %1689 = vmatmul.mubr.f32.gmra.mrb[0].mxu0 %v1622
    %v1690 = vpop.f32.mrb[0].mxu0
    %v1691 = vadd.f32 %v131, %v1690
    %v1692 = vpop.f32.mrb[0].mxu0
    %1693 = vdwg.mxu0
    %s1694 = scalar_lea.vmem %s11, 10
    %1695 = vst.msk [vmem:[%s1694] sm:$0x3] %vm297, %v1691
    %v1696 = vld [vmem:[%s9 + $0xa0] sm:$0xff]
    %v1697 = vld [vmem:[%s9 + $0xa8] sm:$0xff]
    %v1698 = vld [vmem:[%s9 + $0xb0] sm:$0xff]
    %v1699 = vld [vmem:[%s9 + $0xb8] sm:$0xff]
    %1701 = vrot.lane.b32.xlu0 %v1617, 32
    %v1702 = vpop.permute.xlu0 %1701
    %v1703 = vsel %vm153, %v1702, 0
    %1705 = vmatprep.subr.mxu0 0.0
    %1706 = vmatpush1.msra.mxu0 %v1696
    %1707 = vmatprep.subr.mxu0 0.0
    %1708 = vmatpush1.msra.mxu0 %v1697
    %1709 = vmatprep.subr.mxu0 0.0
    %1710 = vmatpush1.msra.mxu0 %v1698
    %1711 = vmatprep.subr.mxu0 0.0
    %1712 = vmatpush1.msra.mxu0 %v1699
    %1713 = vmatprep.subr.mxu0 0.0
    %1714 = vmatpush1.msra.mxu0 0.0
    %1715 = vmatprep.subr.mxu0 0.0
    %1716 = vmatpush1.msra.mxu0 0.0
    %1717 = vmatprep.subr.mxu0 0.0
    %1718 = vmatpush1.msra.mxu0 0.0
    %1719 = vmatprep.subr.mxu0 0.0
    %1720 = vmatpush1.msra.mxu0 0.0
    %1721 = vmatprep.subr.mxu0 0.0
    %1722 = vmatpush1.msra.mxu0 0.0
    %1723 = vmatprep.subr.mxu0 0.0
    %1724 = vmatpush1.msra.mxu0 0.0
    %1725 = vmatprep.subr.mxu0 0.0
    %1726 = vmatpush1.msra.mxu0 0.0
    %1727 = vmatprep.subr.mxu0 0.0
    %1728 = vmatpush1.msra.mxu0 0.0
    %1729 = vmatprep.subr.mxu0 0.0
    %1730 = vmatpush1.msra.mxu0 0.0
    %1731 = vmatprep.subr.mxu0 0.0
    %1732 = vmatpush1.msra.mxu0 0.0
    %1733 = vmatprep.subr.mxu0 0.0
    %1734 = vmatpush1.msra.mxu0 0.0
    %1735 = vmatprep.subr.mxu0 0.0
    %1736 = vmatpush1.msra.mxu0 0.0
    %1737 = vmatprep.subr.mxu0 0.0
    %1738 = vmatpush1.msra.mxu0 0.0
    %1739 = vmatprep.subr.mxu0 0.0
    %1740 = vmatpush1.msra.mxu0 0.0
    %1741 = vmatprep.subr.mxu0 0.0
    %1742 = vmatpush1.msra.mxu0 0.0
    %1743 = vmatprep.subr.mxu0 0.0
    %1744 = vmatpush1.msra.mxu0 0.0
    %1745 = vmatprep.subr.mxu0 0.0
    %1746 = vmatpush1.msra.mxu0 0.0
    %1747 = vmatprep.subr.mxu0 0.0
    %1748 = vmatpush1.msra.mxu0 0.0
    %1749 = vmatprep.subr.mxu0 0.0
    %1750 = vmatpush1.msra.mxu0 0.0
    %1751 = vmatprep.subr.mxu0 0.0
    %1752 = vmatpush1.msra.mxu0 0.0
    %1753 = vmatprep.subr.mxu0 0.0
    %1754 = vmatpush1.msra.mxu0 0.0
    %1755 = vmatprep.subr.mxu0 0.0
    %1756 = vmatpush1.msra.mxu0 0.0
    %1757 = vmatprep.subr.mxu0 0.0
    %1758 = vmatpush1.msra.mxu0 0.0
    %1759 = vmatprep.subr.mxu0 0.0
    %1760 = vmatpush1.msra.mxu0 0.0
    %1761 = vmatprep.subr.mxu0 0.0
    %1762 = vmatpush1.msra.mxu0 0.0
    %1763 = vmatprep.subr.mxu0 0.0
    %1764 = vmatpush1.msra.mxu0 0.0
    %1765 = vmatprep.subr.mxu0 0.0
    %1766 = vmatpush1.msra.mxu0 0.0
    %1767 = vmatprep.subr.mxu0 0.0
    %1768 = vmatpush1.msra.mxu0 0.0
    %1769 = vmatprep.mubr.f32.mxu0 0.0
    %1770 = vmatmul.mubr.f32.gmra.mrb[0].mxu0 %v1703
    %v1771 = vpop.f32.mrb[0].mxu0
    %v1772 = vadd.f32 0.0, %v1771
    %v1773 = vpop.f32.mrb[0].mxu0
    %1774 = vdwg.mxu0
    %v1775 = vadd.f32 %v1498, %v1772
    %v1776 = vpack.c.bf16 %v1618, %v1618
    %v1777 = vpack.c.bf16 %v1617, %v1617
    %1779 = vrot.lane.b32.xlu0 %v1777, 32
    %v1780 = vpop.permute.xlu0 %1779
    %v1782 = vsel %vm153, %v1780, 0
    %1784 = vmatprep.subr.bf16.mxu0 0
    %1785 = vmatpush1.bf16.msra.mxu0 %v149
    %1786 = vmatprep.subr.bf16.mxu0 0
    %1787 = vmatpush1.bf16.msra.mxu0 %v150
    %1788 = vmatprep.subr.bf16.mxu0 0
    %1789 = vmatpush1.bf16.msra.mxu0 0
    %1790 = vmatprep.subr.bf16.mxu0 0
    %1791 = vmatpush1.bf16.msra.mxu0 0
    %1792 = vmatprep.subr.bf16.mxu0 0
    %1793 = vmatpush1.bf16.msra.mxu0 0
    %1794 = vmatprep.subr.bf16.mxu0 0
    %1795 = vmatpush1.bf16.msra.mxu0 0
    %1796 = vmatprep.subr.bf16.mxu0 0
    %1797 = vmatpush1.bf16.msra.mxu0 0
    %1798 = vmatprep.subr.bf16.mxu0 0
    %1799 = vmatpush1.bf16.msra.mxu0 0
    %1800 = vmatprep.subr.bf16.mxu0 0
    %1801 = vmatpush1.bf16.msra.mxu0 0
    %1802 = vmatprep.subr.bf16.mxu0 0
    %1803 = vmatpush1.bf16.msra.mxu0 0
    %1804 = vmatprep.subr.bf16.mxu0 0
    %1805 = vmatpush1.bf16.msra.mxu0 0
    %1806 = vmatprep.subr.bf16.mxu0 0
    %1807 = vmatpush1.bf16.msra.mxu0 0
    %1808 = vmatprep.subr.bf16.mxu0 0
    %1809 = vmatpush1.bf16.msra.mxu0 0
    %1810 = vmatprep.subr.bf16.mxu0 0
    %1811 = vmatpush1.bf16.msra.mxu0 0
    %1812 = vmatprep.subr.bf16.mxu0 0
    %1813 = vmatpush1.bf16.msra.mxu0 0
    %1814 = vmatprep.subr.bf16.mxu0 0
    %1815 = vmatpush1.bf16.msra.mxu0 0
    %1816 = vmatprep.mubr.bf16.mxu0 0
    %1817 = vmatmul.mubr.bf16.gmra.mrb[0].mxu0 %v1782
    %v1818 = vpop.f32.mrb[0].mxu0
    %v1819 = vadd.f32 0.0, %v1818
    %v1820 = vpop.f32.mrb[0].mxu0
    %v1821 = vpop.f32.mrb[0].mxu0
    %v1822 = vpop.f32.mrb[0].mxu0
    %1823 = vdwg.mxu0
    %1825 = vrot.lane.b32.xlu0 %v1776, 32
    %v1826 = vpop.permute.xlu0 %1825
    %v1828 = vsel %vm153, %v1826, 0
    %1830 = vmatprep.subr.bf16.mxu0 0
    %1831 = vmatpush1.bf16.msra.mxu0 %v438
    %1832 = vmatprep.subr.bf16.mxu0 0
    %1833 = vmatpush1.bf16.msra.mxu0 %v439
    %1834 = vmatprep.subr.bf16.mxu0 0
    %1835 = vmatpush1.bf16.msra.mxu0 0
    %1836 = vmatprep.subr.bf16.mxu0 0
    %1837 = vmatpush1.bf16.msra.mxu0 0
    %1838 = vmatprep.subr.bf16.mxu0 0
    %1839 = vmatpush1.bf16.msra.mxu0 0
    %1840 = vmatprep.subr.bf16.mxu0 0
    %1841 = vmatpush1.bf16.msra.mxu0 0
    %1842 = vmatprep.subr.bf16.mxu0 0
    %1843 = vmatpush1.bf16.msra.mxu0 0
    %1844 = vmatprep.subr.bf16.mxu0 0
    %1845 = vmatpush1.bf16.msra.mxu0 0
    %1846 = vmatprep.subr.bf16.mxu0 0
    %1847 = vmatpush1.bf16.msra.mxu0 0
    %1848 = vmatprep.subr.bf16.mxu0 0
    %1849 = vmatpush1.bf16.msra.mxu0 0
    %1850 = vmatprep.subr.bf16.mxu0 0
    %1851 = vmatpush1.bf16.msra.mxu0 0
    %1852 = vmatprep.subr.bf16.mxu0 0
    %1853 = vmatpush1.bf16.msra.mxu0 0
    %1854 = vmatprep.subr.bf16.mxu0 0
    %1855 = vmatpush1.bf16.msra.mxu0 0
    %1856 = vmatprep.subr.bf16.mxu0 0
    %1857 = vmatpush1.bf16.msra.mxu0 0
    %1858 = vmatprep.subr.bf16.mxu0 0
    %1859 = vmatpush1.bf16.msra.mxu0 0
    %1860 = vmatprep.subr.bf16.mxu0 0
    %1861 = vmatpush1.bf16.msra.mxu0 0
    %1862 = vmatprep.mubr.bf16.mxu0 0
    %1863 = vmatmul.mubr.bf16.gmra.mrb[0].mxu0 %v1828
    %v1864 = vpop.f32.mrb[0].mxu0
    %v1865 = vadd.f32 %v1819, %v1864
    %v1866 = vpop.f32.mrb[0].mxu0
    %v1867 = vpop.f32.mrb[0].mxu0
    %v1868 = vpop.f32.mrb[0].mxu0
    %1869 = vdwg.mxu0
    %v1870 = vadd.f32 %v1865, %v124
    %v1871 = vxor.u32 %v1870, 2147483648
    %v1872 = vmul.f32 %v1871, 1.442695
    %v1873 = vpow.pop %v1872
    %v1874 = vadd.f32 %v1873, 1.0
    %v1875 = vrcp.pop %v1874
    %v1876 = vmul.f32 1.0, %v1875
    %v1877 = vtanh.pop %v1870
    %v1878 = vmul.f32 %v1876, %v1611
    %1880 = vrot.lane.b32.xlu0 %v1877, 64
    %v1881 = vpop.permute.xlu0 %1880
    %v1883 = vmul.f32 %v1876, %v1881
    %1885 = vrot.lane.b32.xlu0 %v1883, 32
    %v1886 = vpop.permute.xlu0 %1885
    %v1888 = vadd.f32 %v1878, %v1886
    %v1889 = vtanh.pop %v1888
    %1891 = vrot.lane.b32.xlu0 %v1889, 64
    %v1892 = vpop.permute.xlu0 %1891
    %v1894 = vmul.f32 %v1876, %v1892
    %v1895 = vtanh.pop %v1894
    %1897 = vrot.lane.b32.xlu0 %v1895, 32
    %v1898 = vpop.permute.xlu0 %1897
    %v1899 = vsel %vm153, %v1898, 0
    %1901 = vmatprep.subr.mxu0 0.0
    %1902 = vmatpush1.msra.mxu0 %v108
    %1903 = vmatprep.subr.mxu0 0.0
    %1904 = vmatpush1.msra.mxu0 %v109
    %1905 = vmatprep.subr.mxu0 0.0
    %1906 = vmatpush1.msra.mxu0 %v110
    %1907 = vmatprep.subr.mxu0 0.0
    %1908 = vmatpush1.msra.mxu0 %v111
    %1909 = vmatprep.subr.mxu0 0.0
    %1910 = vmatpush1.msra.mxu0 0.0
    %1911 = vmatprep.subr.mxu0 0.0
    %1912 = vmatpush1.msra.mxu0 0.0
    %1913 = vmatprep.subr.mxu0 0.0
    %1914 = vmatpush1.msra.mxu0 0.0
    %1915 = vmatprep.subr.mxu0 0.0
    %1916 = vmatpush1.msra.mxu0 0.0
    %1917 = vmatprep.subr.mxu0 0.0
    %1918 = vmatpush1.msra.mxu0 0.0
    %1919 = vmatprep.subr.mxu0 0.0
    %1920 = vmatpush1.msra.mxu0 0.0
    %1921 = vmatprep.subr.mxu0 0.0
    %1922 = vmatpush1.msra.mxu0 0.0
    %1923 = vmatprep.subr.mxu0 0.0
    %1924 = vmatpush1.msra.mxu0 0.0
    %1925 = vmatprep.subr.mxu0 0.0
    %1926 = vmatpush1.msra.mxu0 0.0
    %1927 = vmatprep.subr.mxu0 0.0
    %1928 = vmatpush1.msra.mxu0 0.0
    %1929 = vmatprep.subr.mxu0 0.0
    %1930 = vmatpush1.msra.mxu0 0.0
    %1931 = vmatprep.subr.mxu0 0.0
    %1932 = vmatpush1.msra.mxu0 0.0
    %1933 = vmatprep.subr.mxu0 0.0
    %1934 = vmatpush1.msra.mxu0 0.0
    %1935 = vmatprep.subr.mxu0 0.0
    %1936 = vmatpush1.msra.mxu0 0.0
    %1937 = vmatprep.subr.mxu0 0.0
    %1938 = vmatpush1.msra.mxu0 0.0
    %1939 = vmatprep.subr.mxu0 0.0
    %1940 = vmatpush1.msra.mxu0 0.0
    %1941 = vmatprep.subr.mxu0 0.0
    %1942 = vmatpush1.msra.mxu0 0.0
    %1943 = vmatprep.subr.mxu0 0.0
    %1944 = vmatpush1.msra.mxu0 0.0
    %1945 = vmatprep.subr.mxu0 0.0
    %1946 = vmatpush1.msra.mxu0 0.0
    %1947 = vmatprep.subr.mxu0 0.0
    %1948 = vmatpush1.msra.mxu0 0.0
    %1949 = vmatprep.subr.mxu0 0.0
    %1950 = vmatpush1.msra.mxu0 0.0
    %1951 = vmatprep.subr.mxu0 0.0
    %1952 = vmatpush1.msra.mxu0 0.0
    %1953 = vmatprep.subr.mxu0 0.0
    %1954 = vmatpush1.msra.mxu0 0.0
    %1955 = vmatprep.subr.mxu0 0.0
    %1956 = vmatpush1.msra.mxu0 0.0
    %1957 = vmatprep.subr.mxu0 0.0
    %1958 = vmatpush1.msra.mxu0 0.0
    %1959 = vmatprep.subr.mxu0 0.0
    %1960 = vmatpush1.msra.mxu0 0.0
    %1961 = vmatprep.subr.mxu0 0.0
    %1962 = vmatpush1.msra.mxu0 0.0
    %1963 = vmatprep.subr.mxu0 0.0
    %1964 = vmatpush1.msra.mxu0 0.0
    %1965 = vmatprep.mubr.f32.mxu0 0.0
    %1966 = vmatmul.mubr.f32.gmra.mrb[0].mxu0 %v1899
    %v1967 = vpop.f32.mrb[0].mxu0
    %v1968 = vadd.f32 %v131, %v1967
    %v1969 = vpop.f32.mrb[0].mxu0
    %1970 = vdwg.mxu0
    %s1971 = scalar_lea.vmem %s11, 12
    %1972 = vst.msk [vmem:[%s1971] sm:$0x3] %vm297, %v1968
    %v1973 = vld [vmem:[%s9 + $0xc0] sm:$0xff]
    %v1974 = vld [vmem:[%s9 + $0xc8] sm:$0xff]
    %v1975 = vld [vmem:[%s9 + $0xd0] sm:$0xff]
    %v1976 = vld [vmem:[%s9 + $0xd8] sm:$0xff]
    %1978 = vrot.lane.b32.xlu0 %v1894, 32
    %v1979 = vpop.permute.xlu0 %1978
    %v1980 = vsel %vm153, %v1979, 0
    %1982 = vmatprep.subr.mxu0 0.0
    %1983 = vmatpush1.msra.mxu0 %v1973
    %1984 = vmatprep.subr.mxu0 0.0
    %1985 = vmatpush1.msra.mxu0 %v1974
    %1986 = vmatprep.subr.mxu0 0.0
    %1987 = vmatpush1.msra.mxu0 %v1975
    %1988 = vmatprep.subr.mxu0 0.0
    %1989 = vmatpush1.msra.mxu0 %v1976
    %1990 = vmatprep.subr.mxu0 0.0
    %1991 = vmatpush1.msra.mxu0 0.0
    %1992 = vmatprep.subr.mxu0 0.0
    %1993 = vmatpush1.msra.mxu0 0.0
    %1994 = vmatprep.subr.mxu0 0.0
    %1995 = vmatpush1.msra.mxu0 0.0
    %1996 = vmatprep.subr.mxu0 0.0
    %1997 = vmatpush1.msra.mxu0 0.0
    %1998 = vmatprep.subr.mxu0 0.0
    %1999 = vmatpush1.msra.mxu0 0.0
    %2000 = vmatprep.subr.mxu0 0.0
    %2001 = vmatpush1.msra.mxu0 0.0
    %2002 = vmatprep.subr.mxu0 0.0
    %2003 = vmatpush1.msra.mxu0 0.0
    %2004 = vmatprep.subr.mxu0 0.0
    %2005 = vmatpush1.msra.mxu0 0.0
    %2006 = vmatprep.subr.mxu0 0.0
    %2007 = vmatpush1.msra.mxu0 0.0
    %2008 = vmatprep.subr.mxu0 0.0
    %2009 = vmatpush1.msra.mxu0 0.0
    %2010 = vmatprep.subr.mxu0 0.0
    %2011 = vmatpush1.msra.mxu0 0.0
    %2012 = vmatprep.subr.mxu0 0.0
    %2013 = vmatpush1.msra.mxu0 0.0
    %2014 = vmatprep.subr.mxu0 0.0
    %2015 = vmatpush1.msra.mxu0 0.0
    %2016 = vmatprep.subr.mxu0 0.0
    %2017 = vmatpush1.msra.mxu0 0.0
    %2018 = vmatprep.subr.mxu0 0.0
    %2019 = vmatpush1.msra.mxu0 0.0
    %2020 = vmatprep.subr.mxu0 0.0
    %2021 = vmatpush1.msra.mxu0 0.0
    %2022 = vmatprep.subr.mxu0 0.0
    %2023 = vmatpush1.msra.mxu0 0.0
    %2024 = vmatprep.subr.mxu0 0.0
    %2025 = vmatpush1.msra.mxu0 0.0
    %2026 = vmatprep.subr.mxu0 0.0
    %2027 = vmatpush1.msra.mxu0 0.0
    %2028 = vmatprep.subr.mxu0 0.0
    %2029 = vmatpush1.msra.mxu0 0.0
    %2030 = vmatprep.subr.mxu0 0.0
    %2031 = vmatpush1.msra.mxu0 0.0
    %2032 = vmatprep.subr.mxu0 0.0
    %2033 = vmatpush1.msra.mxu0 0.0
    %2034 = vmatprep.subr.mxu0 0.0
    %2035 = vmatpush1.msra.mxu0 0.0
    %2036 = vmatprep.subr.mxu0 0.0
    %2037 = vmatpush1.msra.mxu0 0.0
    %2038 = vmatprep.subr.mxu0 0.0
    %2039 = vmatpush1.msra.mxu0 0.0
    %2040 = vmatprep.subr.mxu0 0.0
    %2041 = vmatpush1.msra.mxu0 0.0
    %2042 = vmatprep.subr.mxu0 0.0
    %2043 = vmatpush1.msra.mxu0 0.0
    %2044 = vmatprep.subr.mxu0 0.0
    %2045 = vmatpush1.msra.mxu0 0.0
    %2046 = vmatprep.mubr.f32.mxu0 0.0
    %2047 = vmatmul.mubr.f32.gmra.mrb[0].mxu0 %v1980
    %v2048 = vpop.f32.mrb[0].mxu0
    %v2049 = vadd.f32 0.0, %v2048
    %v2050 = vpop.f32.mrb[0].mxu0
    %2051 = vdwg.mxu0
    %v2052 = vadd.f32 %v1775, %v2049
    %v2053 = vpack.c.bf16 %v1895, %v1895
    %v2054 = vpack.c.bf16 %v1894, %v1894
    %2056 = vrot.lane.b32.xlu0 %v2054, 32
    %v2057 = vpop.permute.xlu0 %2056
    %v2059 = vsel %vm153, %v2057, 0
    %2061 = vmatprep.subr.bf16.mxu0 0
    %2062 = vmatpush1.bf16.msra.mxu0 %v149
    %2063 = vmatprep.subr.bf16.mxu0 0
    %2064 = vmatpush1.bf16.msra.mxu0 %v150
    %2065 = vmatprep.subr.bf16.mxu0 0
    %2066 = vmatpush1.bf16.msra.mxu0 0
    %2067 = vmatprep.subr.bf16.mxu0 0
    %2068 = vmatpush1.bf16.msra.mxu0 0
    %2069 = vmatprep.subr.bf16.mxu0 0
    %2070 = vmatpush1.bf16.msra.mxu0 0
    %2071 = vmatprep.subr.bf16.mxu0 0
    %2072 = vmatpush1.bf16.msra.mxu0 0
    %2073 = vmatprep.subr.bf16.mxu0 0
    %2074 = vmatpush1.bf16.msra.mxu0 0
    %2075 = vmatprep.subr.bf16.mxu0 0
    %2076 = vmatpush1.bf16.msra.mxu0 0
    %2077 = vmatprep.subr.bf16.mxu0 0
    %2078 = vmatpush1.bf16.msra.mxu0 0
    %2079 = vmatprep.subr.bf16.mxu0 0
    %2080 = vmatpush1.bf16.msra.mxu0 0
    %2081 = vmatprep.subr.bf16.mxu0 0
    %2082 = vmatpush1.bf16.msra.mxu0 0
    %2083 = vmatprep.subr.bf16.mxu0 0
    %2084 = vmatpush1.bf16.msra.mxu0 0
    %2085 = vmatprep.subr.bf16.mxu0 0
    %2086 = vmatpush1.bf16.msra.mxu0 0
    %2087 = vmatprep.subr.bf16.mxu0 0
    %2088 = vmatpush1.bf16.msra.mxu0 0
    %2089 = vmatprep.subr.bf16.mxu0 0
    %2090 = vmatpush1.bf16.msra.mxu0 0
    %2091 = vmatprep.subr.bf16.mxu0 0
    %2092 = vmatpush1.bf16.msra.mxu0 0
    %2093 = vmatprep.mubr.bf16.mxu0 0
    %2094 = vmatmul.mubr.bf16.gmra.mrb[0].mxu0 %v2059
    %v2095 = vpop.f32.mrb[0].mxu0
    %v2096 = vadd.f32 0.0, %v2095
    %v2097 = vpop.f32.mrb[0].mxu0
    %v2098 = vpop.f32.mrb[0].mxu0
    %v2099 = vpop.f32.mrb[0].mxu0
    %2100 = vdwg.mxu0
    %2102 = vrot.lane.b32.xlu0 %v2053, 32
    %v2103 = vpop.permute.xlu0 %2102
    %v2105 = vsel %vm153, %v2103, 0
    %2107 = vmatprep.subr.bf16.mxu0 0
    %2108 = vmatpush1.bf16.msra.mxu0 %v438
    %2109 = vmatprep.subr.bf16.mxu0 0
    %2110 = vmatpush1.bf16.msra.mxu0 %v439
    %2111 = vmatprep.subr.bf16.mxu0 0
    %2112 = vmatpush1.bf16.msra.mxu0 0
    %2113 = vmatprep.subr.bf16.mxu0 0
    %2114 = vmatpush1.bf16.msra.mxu0 0
    %2115 = vmatprep.subr.bf16.mxu0 0
    %2116 = vmatpush1.bf16.msra.mxu0 0
    %2117 = vmatprep.subr.bf16.mxu0 0
    %2118 = vmatpush1.bf16.msra.mxu0 0
    %2119 = vmatprep.subr.bf16.mxu0 0
    %2120 = vmatpush1.bf16.msra.mxu0 0
    %2121 = vmatprep.subr.bf16.mxu0 0
    %2122 = vmatpush1.bf16.msra.mxu0 0
    %2123 = vmatprep.subr.bf16.mxu0 0
    %2124 = vmatpush1.bf16.msra.mxu0 0
    %2125 = vmatprep.subr.bf16.mxu0 0
    %2126 = vmatpush1.bf16.msra.mxu0 0
    %2127 = vmatprep.subr.bf16.mxu0 0
    %2128 = vmatpush1.bf16.msra.mxu0 0
    %2129 = vmatprep.subr.bf16.mxu0 0
    %2130 = vmatpush1.bf16.msra.mxu0 0
    %2131 = vmatprep.subr.bf16.mxu0 0
    %2132 = vmatpush1.bf16.msra.mxu0 0
    %2133 = vmatprep.subr.bf16.mxu0 0
    %2134 = vmatpush1.bf16.msra.mxu0 0
    %2135 = vmatprep.subr.bf16.mxu0 0
    %2136 = vmatpush1.bf16.msra.mxu0 0
    %2137 = vmatprep.subr.bf16.mxu0 0
    %2138 = vmatpush1.bf16.msra.mxu0 0
    %2139 = vmatprep.mubr.bf16.mxu0 0
    %2140 = vmatmul.mubr.bf16.gmra.mrb[0].mxu0 %v2105
    %v2141 = vpop.f32.mrb[0].mxu0
    %v2142 = vadd.f32 %v2096, %v2141
    %v2143 = vpop.f32.mrb[0].mxu0
    %v2144 = vpop.f32.mrb[0].mxu0
    %v2145 = vpop.f32.mrb[0].mxu0
    %2146 = vdwg.mxu0
    %v2147 = vadd.f32 %v2142, %v124
    %v2148 = vxor.u32 %v2147, 2147483648
    %v2149 = vmul.f32 %v2148, 1.442695
    %v2150 = vpow.pop %v2149
    %v2151 = vadd.f32 %v2150, 1.0
    %v2152 = vrcp.pop %v2151
    %v2153 = vmul.f32 1.0, %v2152
    %v2154 = vtanh.pop %v2147
    %v2155 = vmul.f32 %v2153, %v1888
    %2157 = vrot.lane.b32.xlu0 %v2154, 64
    %v2158 = vpop.permute.xlu0 %2157
    %v2160 = vmul.f32 %v2153, %v2158
    %2162 = vrot.lane.b32.xlu0 %v2160, 32
    %v2163 = vpop.permute.xlu0 %2162
    %v2165 = vadd.f32 %v2155, %v2163
    %v2166 = vtanh.pop %v2165
    %2168 = vrot.lane.b32.xlu0 %v2166, 64
    %v2169 = vpop.permute.xlu0 %2168
    %v2171 = vmul.f32 %v2153, %v2169
    %v2172 = vtanh.pop %v2171
    %2174 = vrot.lane.b32.xlu0 %v2172, 32
    %v2175 = vpop.permute.xlu0 %2174
    %v2176 = vsel %vm153, %v2175, 0
    %2178 = vmatprep.subr.mxu0 0.0
    %2179 = vmatpush1.msra.mxu0 %v108
    %2180 = vmatprep.subr.mxu0 0.0
    %2181 = vmatpush1.msra.mxu0 %v109
    %2182 = vmatprep.subr.mxu0 0.0
    %2183 = vmatpush1.msra.mxu0 %v110
    %2184 = vmatprep.subr.mxu0 0.0
    %2185 = vmatpush1.msra.mxu0 %v111
    %2186 = vmatprep.subr.mxu0 0.0
    %2187 = vmatpush1.msra.mxu0 0.0
    %2188 = vmatprep.subr.mxu0 0.0
    %2189 = vmatpush1.msra.mxu0 0.0
    %2190 = vmatprep.subr.mxu0 0.0
    %2191 = vmatpush1.msra.mxu0 0.0
    %2192 = vmatprep.subr.mxu0 0.0
    %2193 = vmatpush1.msra.mxu0 0.0
    %2194 = vmatprep.subr.mxu0 0.0
    %2195 = vmatpush1.msra.mxu0 0.0
    %2196 = vmatprep.subr.mxu0 0.0
    %2197 = vmatpush1.msra.mxu0 0.0
    %2198 = vmatprep.subr.mxu0 0.0
    %2199 = vmatpush1.msra.mxu0 0.0
    %2200 = vmatprep.subr.mxu0 0.0
    %2201 = vmatpush1.msra.mxu0 0.0
    %2202 = vmatprep.subr.mxu0 0.0
    %2203 = vmatpush1.msra.mxu0 0.0
    %2204 = vmatprep.subr.mxu0 0.0
    %2205 = vmatpush1.msra.mxu0 0.0
    %2206 = vmatprep.subr.mxu0 0.0
    %2207 = vmatpush1.msra.mxu0 0.0
    %2208 = vmatprep.subr.mxu0 0.0
    %2209 = vmatpush1.msra.mxu0 0.0
    %2210 = vmatprep.subr.mxu0 0.0
    %2211 = vmatpush1.msra.mxu0 0.0
    %2212 = vmatprep.subr.mxu0 0.0
    %2213 = vmatpush1.msra.mxu0 0.0
    %2214 = vmatprep.subr.mxu0 0.0
    %2215 = vmatpush1.msra.mxu0 0.0
    %2216 = vmatprep.subr.mxu0 0.0
    %2217 = vmatpush1.msra.mxu0 0.0
    %2218 = vmatprep.subr.mxu0 0.0
    %2219 = vmatpush1.msra.mxu0 0.0
    %2220 = vmatprep.subr.mxu0 0.0
    %2221 = vmatpush1.msra.mxu0 0.0
    %2222 = vmatprep.subr.mxu0 0.0
    %2223 = vmatpush1.msra.mxu0 0.0
    %2224 = vmatprep.subr.mxu0 0.0
    %2225 = vmatpush1.msra.mxu0 0.0
    %2226 = vmatprep.subr.mxu0 0.0
    %2227 = vmatpush1.msra.mxu0 0.0
    %2228 = vmatprep.subr.mxu0 0.0
    %2229 = vmatpush1.msra.mxu0 0.0
    %2230 = vmatprep.subr.mxu0 0.0
    %2231 = vmatpush1.msra.mxu0 0.0
    %2232 = vmatprep.subr.mxu0 0.0
    %2233 = vmatpush1.msra.mxu0 0.0
    %2234 = vmatprep.subr.mxu0 0.0
    %2235 = vmatpush1.msra.mxu0 0.0
    %2236 = vmatprep.subr.mxu0 0.0
    %2237 = vmatpush1.msra.mxu0 0.0
    %2238 = vmatprep.subr.mxu0 0.0
    %2239 = vmatpush1.msra.mxu0 0.0
    %2240 = vmatprep.subr.mxu0 0.0
    %2241 = vmatpush1.msra.mxu0 0.0
    %2242 = vmatprep.mubr.f32.mxu0 0.0
    %2243 = vmatmul.mubr.f32.gmra.mrb[0].mxu0 %v2176
    %v2244 = vpop.f32.mrb[0].mxu0
    %v2245 = vadd.f32 %v131, %v2244
    %v2246 = vpop.f32.mrb[0].mxu0
    %2247 = vdwg.mxu0
    %s2248 = scalar_lea.vmem %s11, 14
    %2249 = vst.msk [vmem:[%s2248] sm:$0x3] %vm297, %v2245
    %v2250 = vld [vmem:[%s9 + $0xe0] sm:$0xff]
    %v2251 = vld [vmem:[%s9 + $0xe8] sm:$0xff]
    %v2252 = vld [vmem:[%s9 + $0xf0] sm:$0xff]
    %v2253 = vld [vmem:[%s9 + $0xf8] sm:$0xff]
    %2255 = vrot.lane.b32.xlu0 %v2171, 32
    %v2256 = vpop.permute.xlu0 %2255
    %v2257 = vsel %vm153, %v2256, 0
    %2259 = vmatprep.subr.mxu0 0.0
    %2260 = vmatpush1.msra.mxu0 %v2250
    %2261 = vmatprep.subr.mxu0 0.0
    %2262 = vmatpush1.msra.mxu0 %v2251
    %2263 = vmatprep.subr.mxu0 0.0
    %2264 = vmatpush1.msra.mxu0 %v2252
    %2265 = vmatprep.subr.mxu0 0.0
    %2266 = vmatpush1.msra.mxu0 %v2253
    %2267 = vmatprep.subr.mxu0 0.0
    %2268 = vmatpush1.msra.mxu0 0.0
    %2269 = vmatprep.subr.mxu0 0.0
    %2270 = vmatpush1.msra.mxu0 0.0
    %2271 = vmatprep.subr.mxu0 0.0
    %2272 = vmatpush1.msra.mxu0 0.0
    %2273 = vmatprep.subr.mxu0 0.0
    %2274 = vmatpush1.msra.mxu0 0.0
    %2275 = vmatprep.subr.mxu0 0.0
    %2276 = vmatpush1.msra.mxu0 0.0
    %2277 = vmatprep.subr.mxu0 0.0
    %2278 = vmatpush1.msra.mxu0 0.0
    %2279 = vmatprep.subr.mxu0 0.0
    %2280 = vmatpush1.msra.mxu0 0.0
    %2281 = vmatprep.subr.mxu0 0.0
    %2282 = vmatpush1.msra.mxu0 0.0
    %2283 = vmatprep.subr.mxu0 0.0
    %2284 = vmatpush1.msra.mxu0 0.0
    %2285 = vmatprep.subr.mxu0 0.0
    %2286 = vmatpush1.msra.mxu0 0.0
    %2287 = vmatprep.subr.mxu0 0.0
    %2288 = vmatpush1.msra.mxu0 0.0
    %2289 = vmatprep.subr.mxu0 0.0
    %2290 = vmatpush1.msra.mxu0 0.0
    %2291 = vmatprep.subr.mxu0 0.0
    %2292 = vmatpush1.msra.mxu0 0.0
    %2293 = vmatprep.subr.mxu0 0.0
    %2294 = vmatpush1.msra.mxu0 0.0
    %2295 = vmatprep.subr.mxu0 0.0
    %2296 = vmatpush1.msra.mxu0 0.0
    %2297 = vmatprep.subr.mxu0 0.0
    %2298 = vmatpush1.msra.mxu0 0.0
    %2299 = vmatprep.subr.mxu0 0.0
    %2300 = vmatpush1.msra.mxu0 0.0
    %2301 = vmatprep.subr.mxu0 0.0
    %2302 = vmatpush1.msra.mxu0 0.0
    %2303 = vmatprep.subr.mxu0 0.0
    %2304 = vmatpush1.msra.mxu0 0.0
    %2305 = vmatprep.subr.mxu0 0.0
    %2306 = vmatpush1.msra.mxu0 0.0
    %2307 = vmatprep.subr.mxu0 0.0
    %2308 = vmatpush1.msra.mxu0 0.0
    %2309 = vmatprep.subr.mxu0 0.0
    %2310 = vmatpush1.msra.mxu0 0.0
    %2311 = vmatprep.subr.mxu0 0.0
    %2312 = vmatpush1.msra.mxu0 0.0
    %2313 = vmatprep.subr.mxu0 0.0
    %2314 = vmatpush1.msra.mxu0 0.0
    %2315 = vmatprep.subr.mxu0 0.0
    %2316 = vmatpush1.msra.mxu0 0.0
    %2317 = vmatprep.subr.mxu0 0.0
    %2318 = vmatpush1.msra.mxu0 0.0
    %2319 = vmatprep.subr.mxu0 0.0
    %2320 = vmatpush1.msra.mxu0 0.0
    %2321 = vmatprep.subr.mxu0 0.0
    %2322 = vmatpush1.msra.mxu0 0.0
    %2323 = vmatprep.mubr.f32.mxu0 0.0
    %2324 = vmatmul.mubr.f32.gmra.mrb[0].mxu0 %v2257
    %v2325 = vpop.f32.mrb[0].mxu0
    %v2326 = vadd.f32 0.0, %v2325
    %v2327 = vpop.f32.mrb[0].mxu0
    %2328 = vdwg.mxu0
    %v2329 = vadd.f32 %v2052, %v2326
    %v2330 = vmax.f32 %v2329, 0.0
    %vm2331 = vcmp.ne.f32.partialorder %v2329, %v2329
    %v2332 = vadd.f32 %v2329, 0.0
    %v2333 = vand.u32 2147483647, %v2329
    %v2334 = vsub.f32 0.0, %v2333
    %v2335 = vmul.f32 %v2334, 1.442695
    %v2336 = vpow.pop %v2335
    %v2337 = vadd.f32 %v2336, 1.0
    %v2338 = vlog2.pop %v2337
    %v2339 = vmul.f32 %v2338, 0.6931472
    %v2340 = vmul.f32 -0.5, %v2336
    %v2341 = vadd.f32 %v2340, 1.0
    %v2342 = vmul.f32 %v2341, %v2336
    %v2343 = vand.u32 2147483647, %v2336
    %vm2344 = vcmp.lt.f32.partialorder %v2343, 0.0004427343
    %v2345 = vsel %vm2344, %v2342, %v2339
    %v2346 = vadd.f32 %v2330, %v2345
    %v2347 = vsel %vm2331, %v2332, %v2346
    %2348 = vst.msk [vmem:[#allocation2] sm:$0x3] %vm297, %v2347
    // Predicated region
    $region46: #{lstm_decoder_forward.1} parent=1 // pred_check
      _
    $region47: #{lstm_decoder_forward.1} parent=1 // pred_check_branch
      %2350 = sbr.rel (0) target = $region49
    $region48: #{lstm_decoder_forward.1} parent=1 // pred_region
      _
    $region49: #{lstm_decoder_forward.1} parent=1 // pred_fallthru
      _
    // Predicated region
    $region50: #{lstm_decoder_forward.1} parent=1 // pred_check
      _
    $region51: #{lstm_decoder_forward.1} parent=1 // pred_check_branch
      %2352 = sbr.rel (0) target = $region53
    $region52: #{lstm_decoder_forward.1} parent=1 // pred_region
      %s2354 = ssub.s32 32, 32
      %2355 = vsyncadd [#allocation3], %s2354
      %s2357 = sshll.u32 [#allocation2], 4
      %s2358 = int_to_ptr.vmem [resolvable:$true] %s2357
      %2360 = dma.vmem_to_hbm [thread:$0]  %s2358, 32, %s12, [#allocation3]
    $region53: #{lstm_decoder_forward.1} parent=1 // pred_fallthru
      _
    // Predicated region
    $region54: #{lstm_decoder_forward.1} parent=1 // pred_check
      _
    $region55: #{lstm_decoder_forward.1} parent=1 // pred_check_branch
      %2362 = sbr.rel (0) target = $region57
    $region56: #{lstm_decoder_forward.1} parent=1 // pred_region
      _
    $region57: #{lstm_decoder_forward.1} parent=1 // pred_fallthru
      _
    // Predicated region
    $region58: #{lstm_decoder_forward.1} parent=1 // pred_check
      _
    $region59: #{lstm_decoder_forward.1} parent=1 // pred_check_branch
      %2364 = sbr.rel (0) target = $region61
    $region60: #{lstm_decoder_forward.1} parent=1 // pred_region
      %2365 = dma.done [#allocation3], 32
    $region61: #{lstm_decoder_forward.1} parent=1 // pred_fallthru
      _
    %2366 = vsyncpa [#allocation3], 1

</llo_original>
